<compile_context>
chip_gen: v7x
topology: tpu7x:2x2x1
jax: 0.10.0
libtpu: 0.0.40
codegen_flags: <defaults>
</compile_context>

<pallas_src>
import functools

import jax
import jax.numpy as jnp
from jax.experimental import pallas as pl
from jax.experimental.pallas import tpu as pltpu


def _round_up(x, m):
    return ((x + m - 1) // m) * m


# ----------------------------------------------------------------------------
# Pallas kernel 1: lane-dense GEMM  (M, Cin) @ (Cin, kH*kW*Cout) -> f32
# ----------------------------------------------------------------------------
def _gemm_kernel(a_ref, b_ref, o_ref):
    o_ref[...] = jnp.dot(a_ref[...], b_ref[...],
                         preferred_element_type=jnp.float32).astype(o_ref.dtype)


def gemm_lane_dense(a_bf16, b_bf16):
    """a: (M, K) bf16, b: (K, Nc) bf16  ->  (M, Nc) f32."""
    M, K = a_bf16.shape
    Kb, Nc = b_bf16.shape
    assert K == Kb
    # Per-layer tile: one block for small layers (no wasted padding), 256-row
    # blocks for large layers (>=2 parallel grid steps for megacore / 2 TCs).
    tm = _round_up(M, 8) if M <= 256 else 256
    m_pad = _round_up(M, tm)
    a_p = jnp.pad(a_bf16, ((0, m_pad - M), (0, 0)))

    # TODO(synk): at realistic channel_size (K up to 8192) add a K grid axis
    # ("arbitrary", last) with an f32 VMEM accumulator + pl.when init/finalize
    # and set vmem_limit_bytes so the working set fits v5e/v7x VMEM budgets.
    out = pl.pallas_call(
        _gemm_kernel,
        out_shape=jax.ShapeDtypeStruct((m_pad, Nc), jnp.float32),
        grid_spec=pltpu.PrefetchScalarGridSpec(
            num_scalar_prefetch=0,
            grid=(m_pad // tm,),
            in_specs=[
                pl.BlockSpec((tm, K), lambda i: (i, 0)),   # activation rows tile
                pl.BlockSpec((K, Nc), lambda i: (0, 0)),   # full weight, resident
            ],
            out_specs=pl.BlockSpec((tm, Nc), lambda i: (i, 0)),
        ),
        compiler_params=pltpu.CompilerParams(
            dimension_semantics=("parallel",)),
    )(a_p, b_bf16)
    return out[:M]


# ----------------------------------------------------------------------------
# Pallas kernel 2: fused bias + activation over a lane-dense 2-D view
# ----------------------------------------------------------------------------
def _bias_act_kernel(x_ref, b_ref, o_ref, *, act):
    v = x_ref[...] + b_ref[...]                      # (tr, L) + (1, L) broadcast
    if act == "leaky_relu":
        out = jnp.where(v >= 0, v, 0.2 * v)          # LeakyReLU(negative_slope=0.2)
    else:                                            # sigmoid
        out = jax.nn.sigmoid(v)
    o_ref[...] = out.astype(o_ref.dtype)


def bias_act(x2d, bias_row, act):
    """x2d: (R, L) f32, bias_row: (1, L) f32 -> act(x2d + bias_row)."""
    R, L = x2d.shape
    tr = _round_up(R, 8) if R <= 256 else 256
    r_pad = _round_up(R, tr)
    x_p = jnp.pad(x2d, ((0, r_pad - R), (0, 0)))
    out = pl.pallas_call(
        functools.partial(_bias_act_kernel, act=act),
        out_shape=jax.ShapeDtypeStruct((r_pad, L), jnp.float32),
        grid_spec=pltpu.PrefetchScalarGridSpec(
            num_scalar_prefetch=0,
            grid=(r_pad // tr,),
            in_specs=[
                pl.BlockSpec((tr, L), lambda i: (i, 0)),
                pl.BlockSpec((1, L), lambda i: (0, 0)),
            ],
            out_specs=pl.BlockSpec((tr, L), lambda i: (i, 0)),
        ),
        compiler_params=pltpu.CompilerParams(
            dimension_semantics=("parallel",)),
    )(x_p, bias_row)
    return out[:R]


# ----------------------------------------------------------------------------
# One up_block: ConvTranspose2d(k=4, s=2, padding=0, output_padding=op) + act
#   cols = X @ W (Pallas GEMM)  ->  col2im overlap-add (JAX)  ->  bias+act (Pallas)
# ----------------------------------------------------------------------------
def up_block_apply(x_nhwc, bmat_bf16, bias, *, output_padding=0,
                   act="leaky_relu", stride=2, kh=4, kw=4):
    n, h, w, cin = x_nhwc.shape
    cout = bias.shape[0]
    assert bmat_bf16.shape == (cin, kh * kw * cout)
    h_out = (h - 1) * stride + kh + output_padding
    w_out = (w - 1) * stride + kw + output_padding

    # 1) lane-dense GEMM over all input pixels (bf16 in, f32 accumulate)
    a = x_nhwc.reshape(n * h * w, cin).astype(jnp.bfloat16)
    cols = gemm_lane_dense(a, bmat_bf16)               # (N*H*W, kh*kw*Cout) f32
    cols = cols.reshape(n, h, w, kh, kw, cout)

    # 2) col2im overlap-add:  out[:, i*s+p, j*s+q, :] += cols[:, i, j, p, q, :]
    # TODO(synk): kept in XLA; fusing into a Pallas epilogue needs overlapping
    # output windows (manual DMA) which is not worth it at these sizes.
    out = jnp.zeros((n, h_out, w_out, cout), jnp.float32)
    for p in range(kh):
        for q in range(kw):
            out = out.at[:, p:p + stride * (h - 1) + 1:stride,
                            q:q + stride * (w - 1) + 1:stride, :].add(
                                cols[:, :, :, p, q, :])
    # output_padding rows/cols receive no contribution -> bias only, matching
    # PyTorch ConvTranspose2d semantics.

    # 3) fused bias + activation on a lane-dense (N*H_out, W_out*Cout) view
    y2d = out.reshape(n * h_out, w_out * cout)
    bias_row = jnp.tile(bias, w_out).reshape(1, w_out * cout)
    y = bias_act(y2d, bias_row, act)
    return y.reshape(n, h_out, w_out, cout)


# ----------------------------------------------------------------------------
# Decoder = 4 up_blocks (LeakyReLU x3, Sigmoid on the last).
# ----------------------------------------------------------------------------
def init_decoder_raw(key, channel_size=32, out_channels=3):
    """Raw PyTorch-layout parameters: w (Cin, Cout, 4, 4), b (Cout,)."""
    chans = [channel_size, channel_size // 2, channel_size // 4,
             channel_size // 8, out_channels]
    raw = []
    for li in range(4):
        key, k_w, k_b = jax.random.split(key, 3)
        cin, cout = chans[li], chans[li + 1]
        w = jax.random.normal(k_w, (cin, cout, 4, 4), jnp.float32) * 0.05
        b = jax.random.normal(k_b, (cout,), jnp.float32) * 0.05
        raw.append((w, b))
    return raw


def pack_decoder_params(raw):
    """Precompute lane-dense GEMM weights once: (Cin, kH, kW, Cout) flattened, bf16."""
    packed = []
    for w, b in raw:
        cin, cout, kh, kw = w.shape
        bmat = jnp.transpose(w, (0, 2, 3, 1)).reshape(cin, kh * kw * cout)
        packed.append((bmat.astype(jnp.bfloat16), b))
    return packed


def decoder_forward(params, x_nchw):
    x = jnp.transpose(x_nchw, (0, 2, 3, 1))            # NCHW -> NHWC (once)
    x = up_block_apply(x, *params[0], output_padding=0, act="leaky_relu")
    x = up_block_apply(x, *params[1], output_padding=0, act="leaky_relu")
    x = up_block_apply(x, *params[2], output_padding=1, act="leaky_relu")
    x = up_block_apply(x, *params[3], output_padding=0, act="sigmoid")
    return jnp.transpose(x, (0, 3, 1, 2))              # NHWC -> NCHW (once)


# ----------------------------------------------------------------------------
# Pure-JAX reference (ConvTranspose2d as input-dilated correlation with a
# spatially flipped kernel), using the same bf16 rounding as the Pallas path.
# ----------------------------------------------------------------------------
def _reference_decoder(raw, x_nchw):
    def conv_t(x, w, b, op, act):
        x32 = x.astype(jnp.bfloat16).astype(jnp.float32)
        w32 = w.astype(jnp.bfloat16).astype(jnp.float32)
        wf = w32[:, :, ::-1, ::-1]                     # spatial flip
        w_oihw = jnp.transpose(wf, (1, 0, 2, 3))       # (Cout, Cin, kH, kW)
        y = jax.lax.conv_general_dilated(
            x32, w_oihw, window_strides=(1, 1),
            padding=[(3, 3 + op), (3, 3 + op)],
            lhs_dilation=(2, 2),
            dimension_numbers=("NCHW", "OIHW", "NCHW"),
            precision=jax.lax.Precision.HIGHEST)
        y = y + b[None, :, None, None]
        if act == "leaky_relu":
            return jnp.where(y >= 0, y, 0.2 * y)
        return jax.nn.sigmoid(y)

    x = conv_t(x_nchw, *raw[0], 0, "leaky_relu")
    x = conv_t(x, *raw[1], 0, "leaky_relu")
    x = conv_t(x, *raw[2], 1, "leaky_relu")
    return conv_t(x, *raw[3], 0, "sigmoid")


if __name__ == "__main__":
    key = jax.random.PRNGKey(0)
    kp, kx = jax.random.split(key)

    channel_size = 32   # small stand-in for 512
    out_channels = 3
    raw = init_decoder_raw(kp, channel_size, out_channels)
    params = pack_decoder_params(raw)

    # small latent feature map: (batch=2, C=32, 2, 2) -> output (2, 3, 64, 64)
    x = jax.random.normal(kx, (2, channel_size, 2, 2), jnp.float32)

    y = jax.jit(decoder_forward)(params, x)
    jax.block_until_ready(y)

    assert y.shape == (2, out_channels, 64, 64), y.shape
    assert bool(jnp.all(jnp.isfinite(y)))
    assert bool(jnp.all((y >= 0.0) & (y <= 1.0)))      # sigmoid output range

    # correctness vs the pure-JAX ConvTranspose2d reference
    y_ref = jax.jit(_reference_decoder)(raw, x)
    max_err = float(jnp.max(jnp.abs(y - y_ref)))
    assert max_err < 1e-2, f"max abs err vs reference: {max_err}"

    print("KERNEL_OK")
</pallas_src>

<mosaic_0001>
module attributes {stable_mosaic.version = 11 : i64} {
  func.func @_gemm_kernel(%arg0: i32, %arg1: memref<8x32xbf16, #tpu.memory_space<vmem>>, %arg2: memref<32x256xbf16, #tpu.memory_space<vmem>>, %arg3: memref<8x256xf32, #tpu.memory_space<vmem>>) attributes {dimension_semantics = [#tpu.dimension_semantics<parallel>], iteration_bounds = array<i64: 1>, scalar_prefetch = 0 : i64, scratch_operands = 0 : i64, tpu.core_type = #tpu.core_type<tc>, window_params = [{transform_indices = @transform_0, window_bounds = array<i64: 8, 32>}, {pipeline_mode = #tpu.pipeline_mode<synchronous>, transform_indices = @transform_1, window_bounds = array<i64: 32, 256>}, {transform_indices = @transform_2, window_bounds = array<i64: 8, 256>}]} {
    %c0 = arith.constant 0 : index
    %c0_0 = arith.constant 0 : index
    %0 = vector.load %arg1[%c0, %c0_0] : memref<8x32xbf16, #tpu.memory_space<vmem>>, vector<8x32xbf16>
    %c0_1 = arith.constant 0 : index
    %c0_2 = arith.constant 0 : index
    %1 = vector.load %arg2[%c0_1, %c0_2] : memref<32x256xbf16, #tpu.memory_space<vmem>>, vector<32x256xbf16>
    %cst = arith.constant dense<0.000000e+00> : vector<8x256xf32>
    %2 = tpu.matmul %0, %1, %cst {dimension_numbers = #tpu.dot_dimension_numbers<[1], [0], [0], [1], [0, 0, 1, 1], [], []>} : vector<8x32xbf16>, vector<32x256xbf16>, vector<8x256xf32> -> vector<8x256xf32>
    %c0_3 = arith.constant 0 : index
    %c0_4 = arith.constant 0 : index
    %3 = vector.load %arg3[%c0_3, %c0_4] : memref<8x256xf32, #tpu.memory_space<vmem>>, vector<8x256xf32>
    tpu.vector_store %arg3[%c0_3, %c0_4], %2 {strides = array<i32>} : memref<8x256xf32, #tpu.memory_space<vmem>>, vector<8x256xf32>,
    return
  }
  func.func @transform_0(%arg0: i32) -> (i32, i32) {
    %c0_i32 = arith.constant 0 : i32
    %c0_i32_0 = arith.constant 0 : i32
    return %arg0, %c0_i32 : i32, i32
  }
  func.func @transform_1(%arg0: i32) -> (i32, i32) {
    %c0_i32 = arith.constant 0 : i32
    %c0_i32_0 = arith.constant 0 : i32
    %c0_i32_1 = arith.constant 0 : i32
    return %c0_i32, %c0_i32_0 : i32, i32
  }
  func.func @transform_2(%arg0: i32) -> (i32, i32) {
    %c0_i32 = arith.constant 0 : i32
    %c0_i32_0 = arith.constant 0 : i32
    return %arg0, %c0_i32 : i32, i32
  }
}

module attributes {stable_mosaic.version = 11 : i64} {
  func.func @_bias_act_kernel(%arg0: i32, %arg1: memref<16x96xf32, #tpu.memory_space<vmem>>, %arg2: memref<1x96xf32, #tpu.memory_space<vmem>>, %arg3: memref<16x96xf32, #tpu.memory_space<vmem>>) attributes {dimension_semantics = [#tpu.dimension_semantics<parallel>], iteration_bounds = array<i64: 1>, scalar_prefetch = 0 : i64, scratch_operands = 0 : i64, tpu.core_type = #tpu.core_type<tc>, window_params = [{transform_indices = @transform_0, window_bounds = array<i64: 16, 96>}, {pipeline_mode = #tpu.pipeline_mode<synchronous>, transform_indices = @transform_1, window_bounds = array<i64: 1, 96>}, {transform_indices = @transform_2, window_bounds = array<i64: 16, 96>}]} {
    %c0 = arith.constant 0 : index
    %c0_0 = arith.constant 0 : index
    %0 = vector.load %arg1[%c0, %c0_0] : memref<16x96xf32, #tpu.memory_space<vmem>>, vector<16x96xf32>
    %c0_1 = arith.constant 0 : index
    %c0_2 = arith.constant 0 : index
    %1 = vector.load %arg2[%c0_1, %c0_2] : memref<1x96xf32, #tpu.memory_space<vmem>>, vector<1x96xf32>
    %2 = vector.broadcast %1 : vector<1x96xf32> to vector<16x96xf32>
    %3 = arith.addf %0, %2 : vector<16x96xf32>
    %cst = arith.constant 0.000000e+00 : f32
    %4 = vector.broadcast %cst : f32 to vector<16x96xf32>
    %5 = arith.cmpf oge, %3, %4 : vector<16x96xf32>
    %cst_3 = arith.constant 2.000000e-01 : f32
    %6 = vector.broadcast %cst_3 : f32 to vector<16x96xf32>
    %7 = arith.mulf %6, %3 : vector<16x96xf32>
    %8 = arith.select %5, %3, %7 : vector<16x96xi1>, vector<16x96xf32>
    %c0_4 = arith.constant 0 : index
    %c0_5 = arith.constant 0 : index
    %9 = vector.load %arg3[%c0_4, %c0_5] : memref<16x96xf32, #tpu.memory_space<vmem>>, vector<16x96xf32>
    tpu.vector_store %arg3[%c0_4, %c0_5], %8 {strides = array<i32>} : memref<16x96xf32, #tpu.memory_space<vmem>>, vector<16x96xf32>,
    return
  }
  func.func @transform_0(%arg0: i32) -> (i32, i32) {
    %c0_i32 = arith.constant 0 : i32
    %c0_i32_0 = arith.constant 0 : i32
    return %arg0, %c0_i32 : i32, i32
  }
  func.func @transform_1(%arg0: i32) -> (i32, i32) {
    %c0_i32 = arith.constant 0 : i32
    %c0_i32_0 = arith.constant 0 : i32
    %c0_i32_1 = arith.constant 0 : i32
    return %c0_i32, %c0_i32_0 : i32, i32
  }
  func.func @transform_2(%arg0: i32) -> (i32, i32) {
    %c0_i32 = arith.constant 0 : i32
    %c0_i32_0 = arith.constant 0 : i32
    return %arg0, %c0_i32 : i32, i32
  }
}

module attributes {stable_mosaic.version = 11 : i64} {
  func.func @_gemm_kernel(%arg0: i32, %arg1: memref<72x16xbf16, #tpu.memory_space<vmem>>, %arg2: memref<16x128xbf16, #tpu.memory_space<vmem>>, %arg3: memref<72x128xf32, #tpu.memory_space<vmem>>) attributes {dimension_semantics = [#tpu.dimension_semantics<parallel>], iteration_bounds = array<i64: 1>, scalar_prefetch = 0 : i64, scratch_operands = 0 : i64, tpu.core_type = #tpu.core_type<tc>, window_params = [{transform_indices = @transform_0, window_bounds = array<i64: 72, 16>}, {pipeline_mode = #tpu.pipeline_mode<synchronous>, transform_indices = @transform_1, window_bounds = array<i64: 16, 128>}, {transform_indices = @transform_2, window_bounds = array<i64: 72, 128>}]} {
    %c0 = arith.constant 0 : index
    %c0_0 = arith.constant 0 : index
    %0 = vector.load %arg1[%c0, %c0_0] : memref<72x16xbf16, #tpu.memory_space<vmem>>, vector<72x16xbf16>
    %c0_1 = arith.constant 0 : index
    %c0_2 = arith.constant 0 : index
    %1 = vector.load %arg2[%c0_1, %c0_2] : memref<16x128xbf16, #tpu.memory_space<vmem>>, vector<16x128xbf16>
    %cst = arith.constant dense<0.000000e+00> : vector<72x128xf32>
    %2 = tpu.matmul %0, %1, %cst {dimension_numbers = #tpu.dot_dimension_numbers<[1], [0], [0], [1], [0, 0, 1, 1], [], []>} : vector<72x16xbf16>, vector<16x128xbf16>, vector<72x128xf32> -> vector<72x128xf32>
    %c0_3 = arith.constant 0 : index
    %c0_4 = arith.constant 0 : index
    %3 = vector.load %arg3[%c0_3, %c0_4] : memref<72x128xf32, #tpu.memory_space<vmem>>, vector<72x128xf32>
    tpu.vector_store %arg3[%c0_3, %c0_4], %2 {strides = array<i32>} : memref<72x128xf32, #tpu.memory_space<vmem>>, vector<72x128xf32>,
    return
  }
  func.func @transform_0(%arg0: i32) -> (i32, i32) {
    %c0_i32 = arith.constant 0 : i32
    %c0_i32_0 = arith.constant 0 : i32
    return %arg0, %c0_i32 : i32, i32
  }
  func.func @transform_1(%arg0: i32) -> (i32, i32) {
    %c0_i32 = arith.constant 0 : i32
    %c0_i32_0 = arith.constant 0 : i32
    %c0_i32_1 = arith.constant 0 : i32
    return %c0_i32, %c0_i32_0 : i32, i32
  }
  func.func @transform_2(%arg0: i32) -> (i32, i32) {
    %c0_i32 = arith.constant 0 : i32
    %c0_i32_0 = arith.constant 0 : i32
    return %arg0, %c0_i32 : i32, i32
  }
}

module attributes {stable_mosaic.version = 11 : i64} {
  func.func @_bias_act_kernel(%arg0: i32, %arg1: memref<32x112xf32, #tpu.memory_space<vmem>>, %arg2: memref<1x112xf32, #tpu.memory_space<vmem>>, %arg3: memref<32x112xf32, #tpu.memory_space<vmem>>) attributes {dimension_semantics = [#tpu.dimension_semantics<parallel>], iteration_bounds = array<i64: 1>, scalar_prefetch = 0 : i64, scratch_operands = 0 : i64, tpu.core_type = #tpu.core_type<tc>, window_params = [{transform_indices = @transform_0, window_bounds = array<i64: 32, 112>}, {pipeline_mode = #tpu.pipeline_mode<synchronous>, transform_indices = @transform_1, window_bounds = array<i64: 1, 112>}, {transform_indices = @transform_2, window_bounds = array<i64: 32, 112>}]} {
    %c0 = arith.constant 0 : index
    %c0_0 = arith.constant 0 : index
    %0 = vector.load %arg1[%c0, %c0_0] : memref<32x112xf32, #tpu.memory_space<vmem>>, vector<32x112xf32>
    %c0_1 = arith.constant 0 : index
    %c0_2 = arith.constant 0 : index
    %1 = vector.load %arg2[%c0_1, %c0_2] : memref<1x112xf32, #tpu.memory_space<vmem>>, vector<1x112xf32>
    %2 = vector.broadcast %1 : vector<1x112xf32> to vector<32x112xf32>
    %3 = arith.addf %0, %2 : vector<32x112xf32>
    %cst = arith.constant 0.000000e+00 : f32
    %4 = vector.broadcast %cst : f32 to vector<32x112xf32>
    %5 = arith.cmpf oge, %3, %4 : vector<32x112xf32>
    %cst_3 = arith.constant 2.000000e-01 : f32
    %6 = vector.broadcast %cst_3 : f32 to vector<32x112xf32>
    %7 = arith.mulf %6, %3 : vector<32x112xf32>
    %8 = arith.select %5, %3, %7 : vector<32x112xi1>, vector<32x112xf32>
    %c0_4 = arith.constant 0 : index
    %c0_5 = arith.constant 0 : index
    %9 = vector.load %arg3[%c0_4, %c0_5] : memref<32x112xf32, #tpu.memory_space<vmem>>, vector<32x112xf32>
    tpu.vector_store %arg3[%c0_4, %c0_5], %8 {strides = array<i32>} : memref<32x112xf32, #tpu.memory_space<vmem>>, vector<32x112xf32>,
    return
  }
  func.func @transform_0(%arg0: i32) -> (i32, i32) {
    %c0_i32 = arith.constant 0 : i32
    %c0_i32_0 = arith.constant 0 : i32
    return %arg0, %c0_i32 : i32, i32
  }
  func.func @transform_1(%arg0: i32) -> (i32, i32) {
    %c0_i32 = arith.constant 0 : i32
    %c0_i32_0 = arith.constant 0 : i32
    %c0_i32_1 = arith.constant 0 : i32
    return %c0_i32, %c0_i32_0 : i32, i32
  }
  func.func @transform_2(%arg0: i32) -> (i32, i32) {
    %c0_i32 = arith.constant 0 : i32
    %c0_i32_0 = arith.constant 0 : i32
    return %arg0, %c0_i32 : i32, i32
  }
}

module attributes {stable_mosaic.version = 11 : i64} {
  func.func @_gemm_kernel(%arg0: i32, %arg1: memref<256x8xbf16, #tpu.memory_space<vmem>>, %arg2: memref<8x64xbf16, #tpu.memory_space<vmem>>, %arg3: memref<256x64xf32, #tpu.memory_space<vmem>>) attributes {dimension_semantics = [#tpu.dimension_semantics<parallel>], iteration_bounds = array<i64: 2>, scalar_prefetch = 0 : i64, scratch_operands = 0 : i64, tpu.core_type = #tpu.core_type<tc>, window_params = [{transform_indices = @transform_0, window_bounds = array<i64: 256, 8>}, {pipeline_mode = #tpu.pipeline_mode<synchronous>, transform_indices = @transform_1, window_bounds = array<i64: 8, 64>}, {transform_indices = @transform_2, window_bounds = array<i64: 256, 64>}]} {
    %c0 = arith.constant 0 : index
    %c0_0 = arith.constant 0 : index
    %0 = vector.load %arg1[%c0, %c0_0] : memref<256x8xbf16, #tpu.memory_space<vmem>>, vector<256x8xbf16>
    %c0_1 = arith.constant 0 : index
    %c0_2 = arith.constant 0 : index
    %1 = vector.load %arg2[%c0_1, %c0_2] : memref<8x64xbf16, #tpu.memory_space<vmem>>, vector<8x64xbf16>
    %cst = arith.constant dense<0.000000e+00> : vector<256x64xf32>
    %2 = tpu.matmul %0, %1, %cst {dimension_numbers = #tpu.dot_dimension_numbers<[1], [0], [0], [1], [0, 0, 1, 1], [], []>} : vector<256x8xbf16>, vector<8x64xbf16>, vector<256x64xf32> -> vector<256x64xf32>
    %c0_3 = arith.constant 0 : index
    %c0_4 = arith.constant 0 : index
    %3 = vector.load %arg3[%c0_3, %c0_4] : memref<256x64xf32, #tpu.memory_space<vmem>>, vector<256x64xf32>
    tpu.vector_store %arg3[%c0_3, %c0_4], %2 {strides = array<i32>} : memref<256x64xf32, #tpu.memory_space<vmem>>, vector<256x64xf32>,
    return
  }
  func.func @transform_0(%arg0: i32) -> (i32, i32) {
    %c0_i32 = arith.constant 0 : i32
    %c0_i32_0 = arith.constant 0 : i32
    return %arg0, %c0_i32 : i32, i32
  }
  func.func @transform_1(%arg0: i32) -> (i32, i32) {
    %c0_i32 = arith.constant 0 : i32
    %c0_i32_0 = arith.constant 0 : i32
    %c0_i32_1 = arith.constant 0 : i32
    return %c0_i32, %c0_i32_0 : i32, i32
  }
  func.func @transform_2(%arg0: i32) -> (i32, i32) {
    %c0_i32 = arith.constant 0 : i32
    %c0_i32_0 = arith.constant 0 : i32
    return %arg0, %c0_i32 : i32, i32
  }
}

module attributes {stable_mosaic.version = 11 : i64} {
  func.func @_bias_act_kernel(%arg0: i32, %arg1: memref<64x124xf32, #tpu.memory_space<vmem>>, %arg2: memref<1x124xf32, #tpu.memory_space<vmem>>, %arg3: memref<64x124xf32, #tpu.memory_space<vmem>>) attributes {dimension_semantics = [#tpu.dimension_semantics<parallel>], iteration_bounds = array<i64: 1>, scalar_prefetch = 0 : i64, scratch_operands = 0 : i64, tpu.core_type = #tpu.core_type<tc>, window_params = [{transform_indices = @transform_0, window_bounds = array<i64: 64, 124>}, {pipeline_mode = #tpu.pipeline_mode<synchronous>, transform_indices = @transform_1, window_bounds = array<i64: 1, 124>}, {transform_indices = @transform_2, window_bounds = array<i64: 64, 124>}]} {
    %c0 = arith.constant 0 : index
    %c0_0 = arith.constant 0 : index
    %0 = vector.load %arg1[%c0, %c0_0] : memref<64x124xf32, #tpu.memory_space<vmem>>, vector<64x124xf32>
    %c0_1 = arith.constant 0 : index
    %c0_2 = arith.constant 0 : index
    %1 = vector.load %arg2[%c0_1, %c0_2] : memref<1x124xf32, #tpu.memory_space<vmem>>, vector<1x124xf32>
    %2 = vector.broadcast %1 : vector<1x124xf32> to vector<64x124xf32>
    %3 = arith.addf %0, %2 : vector<64x124xf32>
    %cst = arith.constant 0.000000e+00 : f32
    %4 = vector.broadcast %cst : f32 to vector<64x124xf32>
    %5 = arith.cmpf oge, %3, %4 : vector<64x124xf32>
    %cst_3 = arith.constant 2.000000e-01 : f32
    %6 = vector.broadcast %cst_3 : f32 to vector<64x124xf32>
    %7 = arith.mulf %6, %3 : vector<64x124xf32>
    %8 = arith.select %5, %3, %7 : vector<64x124xi1>, vector<64x124xf32>
    %c0_4 = arith.constant 0 : index
    %c0_5 = arith.constant 0 : index
    %9 = vector.load %arg3[%c0_4, %c0_5] : memref<64x124xf32, #tpu.memory_space<vmem>>, vector<64x124xf32>
    tpu.vector_store %arg3[%c0_4, %c0_5], %8 {strides = array<i32>} : memref<64x124xf32, #tpu.memory_space<vmem>>, vector<64x124xf32>,
    return
  }
  func.func @transform_0(%arg0: i32) -> (i32, i32) {
    %c0_i32 = arith.constant 0 : i32
    %c0_i32_0 = arith.constant 0 : i32
    return %arg0, %c0_i32 : i32, i32
  }
  func.func @transform_1(%arg0: i32) -> (i32, i32) {
    %c0_i32 = arith.constant 0 : i32
    %c0_i32_0 = arith.constant 0 : i32
    %c0_i32_1 = arith.constant 0 : i32
    return %c0_i32, %c0_i32_0 : i32, i32
  }
  func.func @transform_2(%arg0: i32) -> (i32, i32) {
    %c0_i32 = arith.constant 0 : i32
    %c0_i32_0 = arith.constant 0 : i32
    return %arg0, %c0_i32 : i32, i32
  }
}

module attributes {stable_mosaic.version = 11 : i64} {
  func.func @_gemm_kernel(%arg0: i32, %arg1: memref<256x4xbf16, #tpu.memory_space<vmem>>, %arg2: memref<4x48xbf16, #tpu.memory_space<vmem>>, %arg3: memref<256x48xf32, #tpu.memory_space<vmem>>) attributes {dimension_semantics = [#tpu.dimension_semantics<parallel>], iteration_bounds = array<i64: 8>, scalar_prefetch = 0 : i64, scratch_operands = 0 : i64, tpu.core_type = #tpu.core_type<tc>, window_params = [{transform_indices = @transform_0, window_bounds = array<i64: 256, 4>}, {pipeline_mode = #tpu.pipeline_mode<synchronous>, transform_indices = @transform_1, window_bounds = array<i64: 4, 48>}, {transform_indices = @transform_2, window_bounds = array<i64: 256, 48>}]} {
    %c0 = arith.constant 0 : index
    %c0_0 = arith.constant 0 : index
    %0 = vector.load %arg1[%c0, %c0_0] : memref<256x4xbf16, #tpu.memory_space<vmem>>, vector<256x4xbf16>
    %c0_1 = arith.constant 0 : index
    %c0_2 = arith.constant 0 : index
    %1 = vector.load %arg2[%c0_1, %c0_2] : memref<4x48xbf16, #tpu.memory_space<vmem>>, vector<4x48xbf16>
    %cst = arith.constant dense<0.000000e+00> : vector<256x48xf32>
    %2 = tpu.matmul %0, %1, %cst {dimension_numbers = #tpu.dot_dimension_numbers<[1], [0], [0], [1], [0, 0, 1, 1], [], []>} : vector<256x4xbf16>, vector<4x48xbf16>, vector<256x48xf32> -> vector<256x48xf32>
    %c0_3 = arith.constant 0 : index
    %c0_4 = arith.constant 0 : index
    %3 = vector.load %arg3[%c0_3, %c0_4] : memref<256x48xf32, #tpu.memory_space<vmem>>, vector<256x48xf32>
    tpu.vector_store %arg3[%c0_3, %c0_4], %2 {strides = array<i32>} : memref<256x48xf32, #tpu.memory_space<vmem>>, vector<256x48xf32>,
    return
  }
  func.func @transform_0(%arg0: i32) -> (i32, i32) {
    %c0_i32 = arith.constant 0 : i32
    %c0_i32_0 = arith.constant 0 : i32
    return %arg0, %c0_i32 : i32, i32
  }
  func.func @transform_1(%arg0: i32) -> (i32, i32) {
    %c0_i32 = arith.constant 0 : i32
    %c0_i32_0 = arith.constant 0 : i32
    %c0_i32_1 = arith.constant 0 : i32
    return %c0_i32, %c0_i32_0 : i32, i32
  }
  func.func @transform_2(%arg0: i32) -> (i32, i32) {
    %c0_i32 = arith.constant 0 : i32
    %c0_i32_0 = arith.constant 0 : i32
    return %arg0, %c0_i32 : i32, i32
  }
}

module attributes {stable_mosaic.version = 11 : i64} {
  func.func @_bias_act_kernel(%arg0: i32, %arg1: memref<128x192xf32, #tpu.memory_space<vmem>>, %arg2: memref<1x192xf32, #tpu.memory_space<vmem>>, %arg3: memref<128x192xf32, #tpu.memory_space<vmem>>) attributes {dimension_semantics = [#tpu.dimension_semantics<parallel>], iteration_bounds = array<i64: 1>, scalar_prefetch = 0 : i64, scratch_operands = 0 : i64, tpu.core_type = #tpu.core_type<tc>, window_params = [{transform_indices = @transform_0, window_bounds = array<i64: 128, 192>}, {pipeline_mode = #tpu.pipeline_mode<synchronous>, transform_indices = @transform_1, window_bounds = array<i64: 1, 192>}, {transform_indices = @transform_2, window_bounds = array<i64: 128, 192>}]} {
    %c0 = arith.constant 0 : index
    %c0_0 = arith.constant 0 : index
    %0 = vector.load %arg1[%c0, %c0_0] : memref<128x192xf32, #tpu.memory_space<vmem>>, vector<128x192xf32>
    %c0_1 = arith.constant 0 : index
    %c0_2 = arith.constant 0 : index
    %1 = vector.load %arg2[%c0_1, %c0_2] : memref<1x192xf32, #tpu.memory_space<vmem>>, vector<1x192xf32>
    %2 = vector.broadcast %1 : vector<1x192xf32> to vector<128x192xf32>
    %3 = arith.addf %0, %2 : vector<128x192xf32>
    %4 = arith.negf %3 : vector<128x192xf32>
    %5 = math.exp %4 : vector<128x192xf32>
    %cst = arith.constant 1.000000e+00 : f32
    %6 = vector.broadcast %cst : f32 to vector<128x192xf32>
    %7 = arith.addf %6, %5 : vector<128x192xf32>
    %8 = arith.divf %6, %7 : vector<128x192xf32>
    %c0_3 = arith.constant 0 : index
    %c0_4 = arith.constant 0 : index
    %9 = vector.load %arg3[%c0_3, %c0_4] : memref<128x192xf32, #tpu.memory_space<vmem>>, vector<128x192xf32>
    tpu.vector_store %arg3[%c0_3, %c0_4], %8 {strides = array<i32>} : memref<128x192xf32, #tpu.memory_space<vmem>>, vector<128x192xf32>,
    return
  }
  func.func @transform_0(%arg0: i32) -> (i32, i32) {
    %c0_i32 = arith.constant 0 : i32
    %c0_i32_0 = arith.constant 0 : i32
    return %arg0, %c0_i32 : i32, i32
  }
  func.func @transform_1(%arg0: i32) -> (i32, i32) {
    %c0_i32 = arith.constant 0 : i32
    %c0_i32_0 = arith.constant 0 : i32
    %c0_i32_1 = arith.constant 0 : i32
    return %c0_i32, %c0_i32_0 : i32, i32
  }
  func.func @transform_2(%arg0: i32) -> (i32, i32) {
    %c0_i32 = arith.constant 0 : i32
    %c0_i32_0 = arith.constant 0 : i32
    return %arg0, %c0_i32 : i32, i32
  }
}

</mosaic_0001>

<llo_original>
// kernel: tile.23
$region0: #{tile.23}
  #allocation2 [shape = 's32[1]{0}', space=sflag, size = 0x4, scoped, tag = 'scoped memory for tile.23']
  %s0 = inlined_call_operand.hbm [shape: f32[16], index: 0, kind: input, shape index: {}]
  %s1 = inlined_call_operand.vmem [shape: f32[6,16], index: 1, kind: output, shape index: {}]
  $region1: #{tile.23} parent=0
    #allocation0 [shape = 'u8[512]{0}', space=vmem, size = 0x400, scoped, tag = 'operand span for operand 0']
    #allocation1 [shape = 's32[1]{0}', space=sflag, size = 0x4, scoped, tag = 'scoped memory for tile.23']
    %2 = vsyncpa [#allocation1], 0
    // Predicated region
    $region2: #{tile.23} parent=1 // pred_check
      _
    $region3: #{tile.23} parent=1 // pred_check_branch
      %4 = sbr.rel (0) target = $region5
    $region4: #{tile.23} parent=1 // pred_region
      %s6 = ssub.s32 16, 16
      %7 = vsyncadd [#allocation1], %s6
      %s9 = sshll.u32 [#allocation0], 4
      %s10 = int_to_ptr.vmem [resolvable:$true] %s9
      %12 = dma.hbm_to_vmem [thread:$0]  %s0, 16, %s10, [#allocation1]
    $region5: #{tile.23} parent=1 // pred_fallthru
      _
    // Predicated region
    $region6: #{tile.23} parent=1 // pred_check
      _
    $region7: #{tile.23} parent=1 // pred_check_branch
      %14 = sbr.rel (0) target = $region9
    $region8: #{tile.23} parent=1 // pred_region
      %15 = dma.done [#allocation1], 16
    $region9: #{tile.23} parent=1 // pred_fallthru
      _
    %v16 = vld [vmem:[#allocation0] ss:$0 sm:$0xff]
    %17 = vst [vmem:[%s1] sm:$0xff] %v16
    %18 = vsyncpa [#allocation1], 1

// kernel: tile.24
$region0: #{tile.24}
  %s0 = inlined_call_operand.vmem [shape: f32[6,16], index: 0, kind: input, shape index: {}]
  %s1 = inlined_call_operand.vmem [shape: f32[1,96], index: 1, kind: output, shape index: {}]
  $region1: #{tile.24} parent=0
    #allocation0 [shape = 'u8[4096]{0}', space=vmem, size = 0x1000, scoped, tag = 'scoped mem for output reshape']
    %v2 = vld [vmem:[%s0] sm:$0x1]
    %vm3 = vcmask 130048
    %4 = vst.msk [vmem:[#allocation0] sm:$0x1] %vm3, %v2
    %s5 = scalar_lea.vmem %s0, 5
    %v6 = vld [vmem:[%s5] sm:$0x1]
    %7 = vrot.lane.b32.xlu0 %v6, 80
    %v8 = vpop.permute.xlu0 %7
    %vm9 = vcmask 786048
    %10 = vst.msk [vmem:[#allocation0] sm:$0x1] %vm9, %v8
    %s11 = scalar_lea.vmem %s0, 4
    %v12 = vld [vmem:[%s11] sm:$0x1]
    %13 = vrot.lane.b32.xlu0 %v12, 64
    %v14 = vpop.permute.xlu0 %13
    %vm15 = vcmask 654848
    %16 = vst.msk [vmem:[#allocation0] sm:$0x1] %vm15, %v14
    %s17 = scalar_lea.vmem %s0, 3
    %v18 = vld [vmem:[%s17] sm:$0x1]
    %19 = vrot.lane.b32.xlu0 %v18, 48
    %v20 = vpop.permute.xlu0 %19
    %vm21 = vcmask 523648
    %22 = vst.msk [vmem:[#allocation0] sm:$0x1] %vm21, %v20
    %s23 = scalar_lea.vmem %s0, 2
    %v24 = vld [vmem:[%s23] sm:$0x1]
    %25 = vrot.lane.b32.xlu0 %v24, 32
    %v26 = vpop.permute.xlu0 %25
    %vm27 = vcmask 392448
    %28 = vst.msk [vmem:[#allocation0] sm:$0x1] %vm27, %v26
    %s29 = scalar_lea.vmem %s0, 1
    %v30 = vld [vmem:[%s29] sm:$0x1]
    %31 = vrot.lane.b32.xlu0 %v30, 16
    %v32 = vpop.permute.xlu0 %31
    %vm33 = vcmask 261248
    %34 = vst.msk [vmem:[#allocation0] sm:$0x1] %vm33, %v32
    %s36 = sshllo.u32 0, 1
    %v38 = vld [vmem:[#allocation0] sm:%s36]
    %s39 = sshllo.u32 0, 1
    %40 = vst [vmem:[%s1] sm:%s39] %v38

// kernel: decoder_forward.8
$region0: #{decoder_forward.8}
  #allocation0 [shape = 'u32[]', space=smem, size = 0x4, offset = 0x4, fixed_abs, tag = 'smem constant byte address 0x4 - core index']
  #allocation1 [shape = 'u32[144,128]{1,0:T(1,128)}', space=vmem, size = 0x12000, scoped, tag = 'internal scratch']
  %s0 = inlined_call_operand.vmem [shape: bf16[8,32], index: 0, kind: input, shape index: {}]
  %s1 = inlined_call_operand.hbm [shape: bf16[32,256], index: 1, kind: input, shape index: {}]
  %s2 = inlined_call_operand.vmem [shape: f32[8,256], index: 2, kind: output, shape index: {}]
  %s3 = sld [smem:[#allocation0]]
  $region22: #{decoder_forward.8} parent=0
    _
  %s5 = ssub.s32 1, %s3
  %s6 = scalar_select 0, %s5, %s3
  $region1: #{decoder_forward.8} parent=0
    #allocation2 [shape = 'u8[16384]{0}', space=vmem, size = 0x4000, scoped, tag = 'input window, operand 1, single buffered']
    #allocation3 [shape = 's32[1]{0}', space=sflag, size = 0x4, scoped, tag = 'scoped memory for decoder_forward.8']
    %7 = vsyncpa [#allocation3], 0
    // Predicated region
    $region2: #{decoder_forward.8} parent=1 // pred_check
      _
    $region3: #{decoder_forward.8} parent=1 // pred_check_branch
      %9 = sbr.rel (0) target = $region5
    $region4: #{decoder_forward.8} parent=1 // pred_region
      _
    $region5: #{decoder_forward.8} parent=1 // pred_fallthru
      _
    // Predicated region
    $region6: #{decoder_forward.8} parent=1 // pred_check
      _
    $region7: #{decoder_forward.8} parent=1 // pred_check_branch
      %11 = sbr.rel (0) target = $region9
    $region8: #{decoder_forward.8} parent=1 // pred_region
      %s13 = ssub.s32 512, 512
      %14 = vsyncadd [#allocation3], %s13
      %s15 = sshll.u32 [#allocation2], 4
      %s16 = int_to_ptr.vmem [resolvable:$true] %s15
      %21 = dma.hbm_to_vmem [thread:$0]  %s1, 512, %s16, [#allocation3], 128, 128, 8
    $region9: #{decoder_forward.8} parent=1 // pred_fallthru
      _
    // Predicated region
    $region10: #{decoder_forward.8} parent=1 // pred_check
      _
    $region11: #{decoder_forward.8} parent=1 // pred_check_branch
      %23 = sbr.rel (0) target = $region13
    $region12: #{decoder_forward.8} parent=1 // pred_region
      %24 = dma.done [#allocation3], 512
    $region13: #{decoder_forward.8} parent=1 // pred_fallthru
      _
    %v26 = vld [vmem:[%s0] sm:$0xf]
    %v27 = vld [vmem:[#allocation2] sm:$0xff]
    %v28 = vld [vmem:[#allocation2 + $0x8] sm:$0xff]
    %v29 = vld [vmem:[#allocation2 + $0x10] sm:$0xff]
    %v30 = vld [vmem:[#allocation2 + $0x18] sm:$0xff]
    %v35 = vunpack.c.l.b16 %v27
    %v36 = vunpack.c.h.b16 %v27
    %v37 = vunpack.c.l.b16 %v28
    %v38 = vunpack.c.h.b16 %v28
    %v39 = vunpack.c.l.b16 %v29
    %v40 = vunpack.c.h.b16 %v29
    %v41 = vunpack.c.l.b16 %v30
    %v42 = vunpack.c.h.b16 %v30
    %v43 = vpack.c.b16 %v37, %v35
    %v44 = vpack.c.b16 %v38, %v36
    %v45 = vpack.c.b16 %v41, %v39
    %v46 = vpack.c.b16 %v42, %v40
    %vm51 = vcmask 261120
    %v53 = vsel %vm51, %v26, 0
    %55 = vmatprep.subr.bf16.mxu0 %v44
    %56 = vmatpush1.bf16.msra.mxu0 %v43
    %57 = vmatprep.subr.bf16.mxu0 %v46
    %58 = vmatpush1.bf16.msra.mxu0 %v45
    %59 = vmatprep.subr.bf16.mxu0 0
    %60 = vmatpush1.bf16.msra.mxu0 0
    %61 = vmatprep.subr.bf16.mxu0 0
    %62 = vmatpush1.bf16.msra.mxu0 0
    %63 = vmatprep.subr.bf16.mxu0 0
    %64 = vmatpush1.bf16.msra.mxu0 0
    %65 = vmatprep.subr.bf16.mxu0 0
    %66 = vmatpush1.bf16.msra.mxu0 0
    %67 = vmatprep.subr.bf16.mxu0 0
    %68 = vmatpush1.bf16.msra.mxu0 0
    %69 = vmatprep.subr.bf16.mxu0 0
    %70 = vmatpush1.bf16.msra.mxu0 0
    %71 = vmatprep.subr.bf16.mxu0 0
    %72 = vmatpush1.bf16.msra.mxu0 0
    %73 = vmatprep.subr.bf16.mxu0 0
    %74 = vmatpush1.bf16.msra.mxu0 0
    %75 = vmatprep.subr.bf16.mxu0 0
    %76 = vmatpush1.bf16.msra.mxu0 0
    %77 = vmatprep.subr.bf16.mxu0 0
    %78 = vmatpush1.bf16.msra.mxu0 0
    %79 = vmatprep.subr.bf16.mxu0 0
    %80 = vmatpush1.bf16.msra.mxu0 0
    %81 = vmatprep.subr.bf16.mxu0 0
    %82 = vmatpush1.bf16.msra.mxu0 0
    %83 = vmatprep.subr.bf16.mxu0 0
    %84 = vmatpush1.bf16.msra.mxu0 0
    %85 = vmatprep.subr.bf16.mxu0 0
    %86 = vmatpush1.bf16.msra.mxu0 0
    %87 = vmatprep.mubr.bf16.mxu0 0
    %88 = vmatmul.mubr.bf16.gmra.mrb[0].mxu0 %v53
    %v89 = vpop.f32.mrb[0].mxu0
    %v90 = vadd.f32 0.0, %v89
    %v91 = vpop.f32.mrb[0].mxu0
    %v92 = vadd.f32 0.0, %v91
    %v93 = vpop.f32.mrb[0].mxu0
    %v94 = vpop.f32.mrb[0].mxu0
    %95 = vdwg.mxu0
    %96 = vst [vmem:[%s2] sm:$0xff] %v90
    %97 = vst [vmem:[%s2 + $0x8] sm:$0xff] %v92
    // Predicated region
    $region14: #{decoder_forward.8} parent=1 // pred_check
      _
    $region15: #{decoder_forward.8} parent=1 // pred_check_branch
      %99 = sbr.rel (0) target = $region17
    $region16: #{decoder_forward.8} parent=1 // pred_region
      _
    $region17: #{decoder_forward.8} parent=1 // pred_fallthru
      _
    // Predicated region
    $region18: #{decoder_forward.8} parent=1 // pred_check
      _
    $region19: #{decoder_forward.8} parent=1 // pred_check_branch
      %101 = sbr.rel (0) target = $region21
    $region20: #{decoder_forward.8} parent=1 // pred_region
      _
    $region21: #{decoder_forward.8} parent=1 // pred_fallthru
      _
    %102 = vsyncpa [#allocation3], 1

// kernel: decoder_forward.9
$region0: #{decoder_forward.9}
  #allocation0 [shape = 'u32[]', space=smem, size = 0x4, offset = 0x4, fixed_abs, tag = 'smem constant byte address 0x4 - core index']
  #allocation1 [shape = 'u32[144,128]{1,0:T(1,128)}', space=vmem, size = 0x12000, scoped, tag = 'internal scratch']
  %s0 = inlined_call_operand.vmem [shape: f32[16,96], index: 0, kind: input, shape index: {}]
  %s1 = inlined_call_operand.vmem [shape: f32[1,96], index: 1, kind: input, shape index: {}]
  %s2 = inlined_call_operand.vmem [shape: f32[16,96], index: 2, kind: output, shape index: {}]
  %s3 = sld [smem:[#allocation0]]
  $region18: #{decoder_forward.9} parent=0
    _
  %s5 = ssub.s32 1, %s3
  %s6 = scalar_select 0, %s5, %s3
  // Predicated region
  $region2: #{decoder_forward.9} parent=0 // pred_check
    _
  $region3: #{decoder_forward.9} parent=0 // pred_check_branch
    %8 = sbr.rel (0) target = $region5
  $region4: #{decoder_forward.9} parent=0 // pred_region
    _
  $region5: #{decoder_forward.9} parent=0 // pred_fallthru
    _
  // Predicated region
  $region6: #{decoder_forward.9} parent=0 // pred_check
    _
  $region7: #{decoder_forward.9} parent=0 // pred_check_branch
    %10 = sbr.rel (0) target = $region9
  $region8: #{decoder_forward.9} parent=0 // pred_region
    _
  $region9: #{decoder_forward.9} parent=0 // pred_fallthru
    _
  %v11 = vld [vmem:[%s0] sm:$0xff]
  %v12 = vld [vmem:[%s0 + $0x8] sm:$0xff]
  %v13 = vld [vmem:[%s1] sm:$0x1]
  %v15 = vlaneseq
  %v16 = vshrl.u32 %v15, 7
  %v17 = vsub.s32 0, %v16
  %v18 = vrot.slane %v13, %v17
  %v20 = vadd.f32 %v11, %v18
  %v21 = vadd.f32 %v12, %v18
  %vm22 = vcmp.ge.f32.partialorder %v20, 0.0
  %vm23 = vcmp.ge.f32.partialorder %v21, 0.0
  %v24 = vmul.f32 %v20, 0.2
  %v25 = vmul.f32 %v21, 0.2
  %v26 = vsel %vm22, %v20, %v24
  %v27 = vsel %vm23, %v21, %v25
  %vm28 = vcmask 785408
  %29 = vst.msk [vmem:[%s2] sm:$0xff] %vm28, %v26
  %30 = vst.msk [vmem:[%s2 + $0x8] sm:$0xff] %vm28, %v27
  // Predicated region
  $region10: #{decoder_forward.9} parent=0 // pred_check
    _
  $region11: #{decoder_forward.9} parent=0 // pred_check_branch
    %32 = sbr.rel (0) target = $region13
  $region12: #{decoder_forward.9} parent=0 // pred_region
    _
  $region13: #{decoder_forward.9} parent=0 // pred_fallthru
    _
  // Predicated region
  $region14: #{decoder_forward.9} parent=0 // pred_check
    _
  $region15: #{decoder_forward.9} parent=0 // pred_check_branch
    %34 = sbr.rel (0) target = $region17
  $region16: #{decoder_forward.9} parent=0 // pred_region
    _
  $region17: #{decoder_forward.9} parent=0 // pred_fallthru
    _

// kernel: decoder_forward.10
$region0: #{decoder_forward.10}
  #allocation0 [shape = 'u32[]', space=smem, size = 0x4, offset = 0x4, fixed_abs, tag = 'smem constant byte address 0x4 - core index']
  #allocation1 [shape = 'u32[144,128]{1,0:T(1,128)}', space=vmem, size = 0x12000, scoped, tag = 'internal scratch']
  %s0 = inlined_call_operand.vmem [shape: bf16[72,16], index: 0, kind: input, shape index: {}]
  %s1 = inlined_call_operand.hbm [shape: bf16[16,128], index: 1, kind: input, shape index: {}]
  %s2 = inlined_call_operand.vmem [shape: f32[72,128], index: 2, kind: output, shape index: {}]
  %s3 = sld [smem:[#allocation0]]
  $region22: #{decoder_forward.10} parent=0
    _
  %s5 = ssub.s32 1, %s3
  %s6 = scalar_select 0, %s5, %s3
  $region1: #{decoder_forward.10} parent=0
    #allocation2 [shape = 'u8[4096]{0}', space=vmem, size = 0x1000, scoped, tag = 'input window, operand 1, single buffered']
    #allocation3 [shape = 's32[1]{0}', space=sflag, size = 0x4, scoped, tag = 'scoped memory for decoder_forward.10']
    %7 = vsyncpa [#allocation3], 0
    // Predicated region
    $region2: #{decoder_forward.10} parent=1 // pred_check
      _
    $region3: #{decoder_forward.10} parent=1 // pred_check_branch
      %9 = sbr.rel (0) target = $region5
    $region4: #{decoder_forward.10} parent=1 // pred_region
      _
    $region5: #{decoder_forward.10} parent=1 // pred_fallthru
      _
    // Predicated region
    $region6: #{decoder_forward.10} parent=1 // pred_check
      _
    $region7: #{decoder_forward.10} parent=1 // pred_check_branch
      %11 = sbr.rel (0) target = $region9
    $region8: #{decoder_forward.10} parent=1 // pred_region
      %s13 = ssub.s32 128, 128
      %14 = vsyncadd [#allocation3], %s13
      %s15 = sshll.u32 [#allocation2], 4
      %s16 = int_to_ptr.vmem [resolvable:$true] %s15
      %21 = dma.hbm_to_vmem [thread:$0]  %s1, 128, %s16, [#allocation3], 64, 64, 4
    $region9: #{decoder_forward.10} parent=1 // pred_fallthru
      _
    // Predicated region
    $region10: #{decoder_forward.10} parent=1 // pred_check
      _
    $region11: #{decoder_forward.10} parent=1 // pred_check_branch
      %23 = sbr.rel (0) target = $region13
    $region12: #{decoder_forward.10} parent=1 // pred_region
      %24 = dma.done [#allocation3], 128
    $region13: #{decoder_forward.10} parent=1 // pred_fallthru
      _
    %v26 = vld [vmem:[%s0] sm:$0xf]
    %v27 = vld [vmem:[%s0 + $0x4] sm:$0xf]
    %v28 = vld [vmem:[%s0 + $0x8] sm:$0xf]
    %v29 = vld [vmem:[%s0 + $0xc] sm:$0xf]
    %v30 = vld [vmem:[%s0 + $0x10] sm:$0xf]
    %v31 = vld [vmem:[%s0 + $0x14] sm:$0xf]
    %v32 = vld [vmem:[%s0 + $0x18] sm:$0xf]
    %v33 = vld [vmem:[%s0 + $0x1c] sm:$0xf]
    %v34 = vld [vmem:[%s0 + $0x20] sm:$0xf]
    %v35 = vld [vmem:[#allocation2] sm:$0xf]
    %v36 = vld [vmem:[#allocation2 + $0x4] sm:$0xf]
    %v46 = vunpack.c.l.b16 %v26
    %v47 = vunpack.c.l.b16 %v27
    %v48 = vunpack.c.l.b16 %v28
    %v49 = vunpack.c.l.b16 %v29
    %v50 = vunpack.c.l.b16 %v30
    %v51 = vunpack.c.l.b16 %v31
    %v52 = vunpack.c.l.b16 %v32
    %v53 = vunpack.c.l.b16 %v33
    %v54 = vunpack.c.l.b16 %v34
    %v55 = vpack.c.b16 %v47, %v46
    %v56 = vpack.c.b16 %v49, %v48
    %v57 = vpack.c.b16 %v51, %v50
    %v58 = vpack.c.b16 %v53, %v52
    %v59 = vpack.c.b16 %v54, %v54
    %v62 = vunpack.c.l.b16 %v35
    %v63 = vunpack.c.l.b16 %v36
    %v64 = vpack.c.b16 %v63, %v62
    %vm66 = vcmask 130048
    %v68 = vsel %vm66, %v55, 0
    %v71 = vsel %vm66, %v56, 0
    %v74 = vsel %vm66, %v57, 0
    %v77 = vsel %vm66, %v58, 0
    %v80 = vsel %vm66, %v59, 0
    %82 = vmatprep.subr.bf16.mxu0 0
    %83 = vmatpush1.bf16.msra.mxu0 %v64
    %84 = vmatprep.subr.bf16.mxu0 0
    %85 = vmatpush1.bf16.msra.mxu0 0
    %86 = vmatprep.subr.bf16.mxu0 0
    %87 = vmatpush1.bf16.msra.mxu0 0
    %88 = vmatprep.subr.bf16.mxu0 0
    %89 = vmatpush1.bf16.msra.mxu0 0
    %90 = vmatprep.subr.bf16.mxu0 0
    %91 = vmatpush1.bf16.msra.mxu0 0
    %92 = vmatprep.subr.bf16.mxu0 0
    %93 = vmatpush1.bf16.msra.mxu0 0
    %94 = vmatprep.subr.bf16.mxu0 0
    %95 = vmatpush1.bf16.msra.mxu0 0
    %96 = vmatprep.subr.bf16.mxu0 0
    %97 = vmatpush1.bf16.msra.mxu0 0
    %98 = vmatprep.subr.bf16.mxu0 0
    %99 = vmatpush1.bf16.msra.mxu0 0
    %100 = vmatprep.subr.bf16.mxu0 0
    %101 = vmatpush1.bf16.msra.mxu0 0
    %102 = vmatprep.subr.bf16.mxu0 0
    %103 = vmatpush1.bf16.msra.mxu0 0
    %104 = vmatprep.subr.bf16.mxu0 0
    %105 = vmatpush1.bf16.msra.mxu0 0
    %106 = vmatprep.subr.bf16.mxu0 0
    %107 = vmatpush1.bf16.msra.mxu0 0
    %108 = vmatprep.subr.bf16.mxu0 0
    %109 = vmatpush1.bf16.msra.mxu0 0
    %110 = vmatprep.subr.bf16.mxu0 0
    %111 = vmatpush1.bf16.msra.mxu0 0
    %112 = vmatprep.subr.bf16.mxu0 0
    %113 = vmatpush1.bf16.msra.mxu0 0
    %114 = vmatprep.mubr.bf16.mxu0 0
    %115 = vmatmul.mubr.bf16.gmra.mrb[0].mxu0 %v68
    %v116 = vpop.f32.mrb[0].mxu0
    %v117 = vadd.f32 0.0, %v116
    %v118 = vpop.f32.mrb[0].mxu0
    %v119 = vpop.f32.mrb[0].mxu0
    %v120 = vadd.f32 0.0, %v119
    %v121 = vpop.f32.mrb[0].mxu0
    %122 = vmatprep.mubr.bf16.mxu0 0
    %123 = vmatmul.mubr.bf16.gmra.mrb[0].mxu0 %v71
    %v124 = vpop.f32.mrb[0].mxu0
    %v125 = vadd.f32 0.0, %v124
    %v126 = vpop.f32.mrb[0].mxu0
    %v127 = vpop.f32.mrb[0].mxu0
    %v128 = vadd.f32 0.0, %v127
    %v129 = vpop.f32.mrb[0].mxu0
    %130 = vmatprep.mubr.bf16.mxu0 0
    %131 = vmatmul.mubr.bf16.gmra.mrb[0].mxu0 %v74
    %v132 = vpop.f32.mrb[0].mxu0
    %v133 = vadd.f32 0.0, %v132
    %v134 = vpop.f32.mrb[0].mxu0
    %v135 = vpop.f32.mrb[0].mxu0
    %v136 = vadd.f32 0.0, %v135
    %v137 = vpop.f32.mrb[0].mxu0
    %138 = vmatprep.mubr.bf16.mxu0 0
    %139 = vmatmul.mubr.bf16.gmra.mrb[0].mxu0 %v77
    %v140 = vpop.f32.mrb[0].mxu0
    %v141 = vadd.f32 0.0, %v140
    %v142 = vpop.f32.mrb[0].mxu0
    %v143 = vpop.f32.mrb[0].mxu0
    %v144 = vadd.f32 0.0, %v143
    %v145 = vpop.f32.mrb[0].mxu0
    %146 = vmatprep.mubr.bf16.mxu0 0
    %147 = vmatmul.mubr.bf16.gmra.mrb[0].mxu0 %v80
    %v148 = vpop.f32.mrb[0].mxu0
    %v149 = vadd.f32 0.0, %v148
    %v150 = vpop.f32.mrb[0].mxu0
    %v151 = vpop.f32.mrb[0].mxu0
    %v152 = vpop.f32.mrb[0].mxu0
    %153 = vdwg.mxu0
    %154 = vst [vmem:[%s2] sm:$0xff] %v117
    %155 = vst [vmem:[%s2 + $0x8] sm:$0xff] %v120
    %156 = vst [vmem:[%s2 + $0x10] sm:$0xff] %v125
    %157 = vst [vmem:[%s2 + $0x18] sm:$0xff] %v128
    %158 = vst [vmem:[%s2 + $0x20] sm:$0xff] %v133
    %159 = vst [vmem:[%s2 + $0x28] sm:$0xff] %v136
    %160 = vst [vmem:[%s2 + $0x30] sm:$0xff] %v141
    %161 = vst [vmem:[%s2 + $0x38] sm:$0xff] %v144
    %162 = vst [vmem:[%s2 + $0x40] sm:$0xff] %v149
    // Predicated region
    $region14: #{decoder_forward.10} parent=1 // pred_check
      _
    $region15: #{decoder_forward.10} parent=1 // pred_check_branch
      %164 = sbr.rel (0) target = $region17
    $region16: #{decoder_forward.10} parent=1 // pred_region
      _
    $region17: #{decoder_forward.10} parent=1 // pred_fallthru
      _
    // Predicated region
    $region18: #{decoder_forward.10} parent=1 // pred_check
      _
    $region19: #{decoder_forward.10} parent=1 // pred_check_branch
      %166 = sbr.rel (0) target = $region21
    $region20: #{decoder_forward.10} parent=1 // pred_region
      _
    $region21: #{decoder_forward.10} parent=1 // pred_fallthru
      _
    %167 = vsyncpa [#allocation3], 1

// kernel: tile.28
$region0: #{tile.28}
  #allocation0 [shape = 's32[1]{0}', space=sflag, size = 0x4, scoped, tag = 'scoped memory for tile.28']
  %s0 = inlined_call_operand.vmem [shape: f32[8], index: 0, kind: input, shape index: {}]
  %s1 = inlined_call_operand.vmem [shape: f32[14,8], index: 1, kind: output, shape index: {}]
  // Predicated region
  $region2: #{tile.28} parent=0 // pred_check
    _
  $region3: #{tile.28} parent=0 // pred_check_branch
    %3 = sbr.rel (0) target = $region5
  $region4: #{tile.28} parent=0 // pred_region
    _
  $region5: #{tile.28} parent=0 // pred_fallthru
    _
  %v4 = vld [vmem:[%s0] ss:$0 sm:$0xff]
  %5 = vst [vmem:[%s1] sm:$0xff] %v4
  %s6 = scalar_lea.vmem %s1, 8
  %7 = vst [vmem:[%s6] sm:$0xff] %v4

// kernel: tile.29
$region0: #{tile.29}
  %s0 = inlined_call_operand.vmem [shape: f32[14,8], index: 0, kind: input, shape index: {}]
  %s1 = inlined_call_operand.vmem [shape: f32[1,112], index: 1, kind: output, shape index: {}]
  $region1: #{tile.29} parent=0
    #allocation0 [shape = 'u8[4096]{0}', space=vmem, size = 0x1000, scoped, tag = 'scoped mem for output reshape']
    %v2 = vld [vmem:[%s0] sm:$0x1]
    %vm3 = vcmask 64512
    %4 = vst.msk [vmem:[#allocation0] sm:$0x1] %vm3, %v2
    %s5 = scalar_lea.vmem %s0, 13
    %v6 = vld [vmem:[%s5] sm:$0x1]
    %7 = vrot.lane.b32.xlu0 %v6, 104
    %v8 = vpop.permute.xlu0 %7
    %vm9 = vcmask 917312
    %10 = vst.msk [vmem:[#allocation0] sm:$0x1] %vm9, %v8
    %s11 = scalar_lea.vmem %s0, 12
    %v12 = vld [vmem:[%s11] sm:$0x1]
    %13 = vrot.lane.b32.xlu0 %v12, 96
    %v14 = vpop.permute.xlu0 %13
    %vm15 = vcmask 851712
    %16 = vst.msk [vmem:[#allocation0] sm:$0x1] %vm15, %v14
    %s17 = scalar_lea.vmem %s0, 11
    %v18 = vld [vmem:[%s17] sm:$0x1]
    %19 = vrot.lane.b32.xlu0 %v18, 88
    %v20 = vpop.permute.xlu0 %19
    %vm21 = vcmask 786112
    %22 = vst.msk [vmem:[#allocation0] sm:$0x1] %vm21, %v20
    %s23 = scalar_lea.vmem %s0, 10
    %v24 = vld [vmem:[%s23] sm:$0x1]
    %25 = vrot.lane.b32.xlu0 %v24, 80
    %v26 = vpop.permute.xlu0 %25
    %vm27 = vcmask 720512
    %28 = vst.msk [vmem:[#allocation0] sm:$0x1] %vm27, %v26
    %s29 = scalar_lea.vmem %s0, 9
    %v30 = vld [vmem:[%s29] sm:$0x1]
    %31 = vrot.lane.b32.xlu0 %v30, 72
    %v32 = vpop.permute.xlu0 %31
    %vm33 = vcmask 654912
    %34 = vst.msk [vmem:[#allocation0] sm:$0x1] %vm33, %v32
    %s35 = scalar_lea.vmem %s0, 8
    %v36 = vld [vmem:[%s35] sm:$0x1]
    %37 = vrot.lane.b32.xlu0 %v36, 64
    %v38 = vpop.permute.xlu0 %37
    %vm39 = vcmask 589312
    %40 = vst.msk [vmem:[#allocation0] sm:$0x1] %vm39, %v38
    %s41 = scalar_lea.vmem %s0, 7
    %v42 = vld [vmem:[%s41] sm:$0x1]
    %43 = vrot.lane.b32.xlu0 %v42, 56
    %v44 = vpop.permute.xlu0 %43
    %vm45 = vcmask 523712
    %46 = vst.msk [vmem:[#allocation0] sm:$0x1] %vm45, %v44
    %s47 = scalar_lea.vmem %s0, 6
    %v48 = vld [vmem:[%s47] sm:$0x1]
    %49 = vrot.lane.b32.xlu0 %v48, 48
    %v50 = vpop.permute.xlu0 %49
    %vm51 = vcmask 458112
    %52 = vst.msk [vmem:[#allocation0] sm:$0x1] %vm51, %v50
    %s53 = scalar_lea.vmem %s0, 5
    %v54 = vld [vmem:[%s53] sm:$0x1]
    %55 = vrot.lane.b32.xlu0 %v54, 40
    %v56 = vpop.permute.xlu0 %55
    %vm57 = vcmask 392512
    %58 = vst.msk [vmem:[#allocation0] sm:$0x1] %vm57, %v56
    %s59 = scalar_lea.vmem %s0, 4
    %v60 = vld [vmem:[%s59] sm:$0x1]
    %61 = vrot.lane.b32.xlu0 %v60, 32
    %v62 = vpop.permute.xlu0 %61
    %vm63 = vcmask 326912
    %64 = vst.msk [vmem:[#allocation0] sm:$0x1] %vm63, %v62
    %s65 = scalar_lea.vmem %s0, 3
    %v66 = vld [vmem:[%s65] sm:$0x1]
    %67 = vrot.lane.b32.xlu0 %v66, 24
    %v68 = vpop.permute.xlu0 %67
    %vm69 = vcmask 261312
    %70 = vst.msk [vmem:[#allocation0] sm:$0x1] %vm69, %v68
    %s71 = scalar_lea.vmem %s0, 2
    %v72 = vld [vmem:[%s71] sm:$0x1]
    %73 = vrot.lane.b32.xlu0 %v72, 16
    %v74 = vpop.permute.xlu0 %73
    %vm75 = vcmask 195712
    %76 = vst.msk [vmem:[#allocation0] sm:$0x1] %vm75, %v74
    %s77 = scalar_lea.vmem %s0, 1
    %v78 = vld [vmem:[%s77] sm:$0x1]
    %79 = vrot.lane.b32.xlu0 %v78, 8
    %v80 = vpop.permute.xlu0 %79
    %vm81 = vcmask 130112
    %82 = vst.msk [vmem:[#allocation0] sm:$0x1] %vm81, %v80
    %s84 = sshllo.u32 0, 1
    %v86 = vld [vmem:[#allocation0] sm:%s84]
    %s87 = sshllo.u32 0, 1
    %88 = vst [vmem:[%s1] sm:%s87] %v86

// kernel: decoder_forward.11
$region0: #{decoder_forward.11}
  #allocation0 [shape = 'u32[]', space=smem, size = 0x4, offset = 0x4, fixed_abs, tag = 'smem constant byte address 0x4 - core index']
  #allocation1 [shape = 'u32[144,128]{1,0:T(1,128)}', space=vmem, size = 0x12000, scoped, tag = 'internal scratch']
  %s0 = inlined_call_operand.vmem [shape: f32[32,112], index: 0, kind: input, shape index: {}]
  %s1 = inlined_call_operand.vmem [shape: f32[1,112], index: 1, kind: input, shape index: {}]
  %s2 = inlined_call_operand.vmem [shape: f32[32,112], index: 2, kind: output, shape index: {}]
  %s3 = sld [smem:[#allocation0]]
  $region18: #{decoder_forward.11} parent=0
    _
  %s5 = ssub.s32 1, %s3
  %s6 = scalar_select 0, %s5, %s3
  // Predicated region
  $region2: #{decoder_forward.11} parent=0 // pred_check
    _
  $region3: #{decoder_forward.11} parent=0 // pred_check_branch
    %8 = sbr.rel (0) target = $region5
  $region4: #{decoder_forward.11} parent=0 // pred_region
    _
  $region5: #{decoder_forward.11} parent=0 // pred_fallthru
    _
  // Predicated region
  $region6: #{decoder_forward.11} parent=0 // pred_check
    _
  $region7: #{decoder_forward.11} parent=0 // pred_check_branch
    %10 = sbr.rel (0) target = $region9
  $region8: #{decoder_forward.11} parent=0 // pred_region
    _
  $region9: #{decoder_forward.11} parent=0 // pred_fallthru
    _
  %v11 = vld [vmem:[%s0] sm:$0xff]
  %v12 = vld [vmem:[%s0 + $0x8] sm:$0xff]
  %v13 = vld [vmem:[%s0 + $0x10] sm:$0xff]
  %v14 = vld [vmem:[%s0 + $0x18] sm:$0xff]
  %v15 = vld [vmem:[%s1] sm:$0x1]
  %v17 = vlaneseq
  %v18 = vshrl.u32 %v17, 7
  %v19 = vsub.s32 0, %v18
  %v20 = vrot.slane %v15, %v19
  %v22 = vadd.f32 %v11, %v20
  %v23 = vadd.f32 %v12, %v20
  %v24 = vadd.f32 %v13, %v20
  %v25 = vadd.f32 %v14, %v20
  %vm26 = vcmp.ge.f32.partialorder %v22, 0.0
  %vm27 = vcmp.ge.f32.partialorder %v23, 0.0
  %vm28 = vcmp.ge.f32.partialorder %v24, 0.0
  %vm29 = vcmp.ge.f32.partialorder %v25, 0.0
  %v30 = vmul.f32 %v22, 0.2
  %v31 = vmul.f32 %v23, 0.2
  %v32 = vmul.f32 %v24, 0.2
  %v33 = vmul.f32 %v25, 0.2
  %v34 = vsel %vm26, %v22, %v30
  %v35 = vsel %vm27, %v23, %v31
  %v36 = vsel %vm28, %v24, %v32
  %v37 = vsel %vm29, %v25, %v33
  %vm38 = vcmask 916480
  %39 = vst.msk [vmem:[%s2] sm:$0xff] %vm38, %v34
  %40 = vst.msk [vmem:[%s2 + $0x8] sm:$0xff] %vm38, %v35
  %41 = vst.msk [vmem:[%s2 + $0x10] sm:$0xff] %vm38, %v36
  %42 = vst.msk [vmem:[%s2 + $0x18] sm:$0xff] %vm38, %v37
  // Predicated region
  $region10: #{decoder_forward.11} parent=0 // pred_check
    _
  $region11: #{decoder_forward.11} parent=0 // pred_check_branch
    %44 = sbr.rel (0) target = $region13
  $region12: #{decoder_forward.11} parent=0 // pred_region
    _
  $region13: #{decoder_forward.11} parent=0 // pred_fallthru
    _
  // Predicated region
  $region14: #{decoder_forward.11} parent=0 // pred_check
    _
  $region15: #{decoder_forward.11} parent=0 // pred_check_branch
    %46 = sbr.rel (0) target = $region17
  $region16: #{decoder_forward.11} parent=0 // pred_region
    _
  $region17: #{decoder_forward.11} parent=0 // pred_fallthru
    _

// kernel: decoder_forward.12
$region0: #{decoder_forward.12}
  #allocation0 [shape = 'u32[]', space=smem, size = 0x4, offset = 0x4, fixed_abs, tag = 'smem constant byte address 0x4 - core index']
  #allocation1 [shape = 'u32[144,128]{1,0:T(1,128)}', space=vmem, size = 0x12000, scoped, tag = 'internal scratch']
  %s0 = inlined_call_operand.vmem [shape: bf16[512,8], index: 0, kind: input, shape index: {}]
  %s1 = inlined_call_operand.vmem [shape: bf16[8,64], index: 1, kind: input, shape index: {}]
  %s2 = inlined_call_operand.vmem [shape: f32[512,64], index: 2, kind: output, shape index: {}]
  %s3 = sld [smem:[#allocation0]]
  $region41: #{decoder_forward.12} parent=0
    _
  %s5 = ssub.s32 1, %s3
  %s6 = scalar_select 0, %s5, %s3
  loop: start=0, step=1, limit=4
  $region2: #{decoder_forward.12} parent=0 // loop_pre_header
    _
  $region3: #{decoder_forward.12} parent=0 // loop_header
    %s8 = sphi 0, %s12
    %p9 = scmp.ge.s32.totalorder %s8, 4
    %s18 = sphi 0, %s20
    %s21 = sphi 0, %s18
    %s22 = sphi 0, %s21
    %s38 = sphi 0, %s22
    %s42 = sphi 0, %s42
    %s44 = sphi 0, %s42
    %s45 = sphi 0, %s44
    %s59 = sphi 0, %s45
    %s65 = sphi 0, %s67
    %s68 = sphi 0, %s65
    %s69 = sphi 0, %s68
    %s85 = sphi 0, %s69
  $region4: #{decoder_forward.12} parent=0 // loop_header_branch
    %11 = sbr.rel (%p9) target = $region8
  $region5: #{decoder_forward.12} parent=0 // loop_body
    %s13 = ssub.s32 %s8, 1
    %s14 = ssub.s32 %s8, 2
    %s15 = sadd.s32 %s8, 1
    %s16 = ssub.s32 %s8, %s15
    %p17 = scmp.eq.s32.totalorder %s16, 0
    %s19 = sadd.s32 %s18, 1
    %s20 = scalar_select %p17, %s18, %s19
    %p23 = pneg %p17
    %p24 = scmp.eq.s32.totalorder %s8, 1
    %p25 = por %p23, %p24
    %p26 = scmp.ne.s32.totalorder %s18, %s21
    %p27 = scmp.eq.s32.totalorder %s8, 0
    %p28 = por %p26, %p27
    %p29 = scmp.ne.s32.totalorder %s18, %s21
    %p30 = scmp.eq.s32.totalorder %s13, 1
    %p31 = por %p29, %p30
    %p32 = scmp.ne.s32.totalorder %s21, %s22
    %p33 = scmp.eq.s32.totalorder %s13, 0
    %p34 = por %p32, %p33
    %p35 = scmp.ne.s32.totalorder %s21, %s22
    %p36 = scmp.eq.s32.totalorder %s14, 1
    %p37 = por %p35, %p36
    %p39 = scmp.ne.s32.totalorder %s22, %s38
    %p40 = scmp.eq.s32.totalorder %s14, 0
    %p41 = por %p39, %p40
    %s43 = sadd.s32 %s42, 1
    %p46 = scmp.eq.s32.totalorder %s8, 1
    %p47 = scmp.ne.s32.totalorder %s42, %s44
    %p48 = scmp.eq.s32.totalorder %s8, 0
    %p49 = por %p47, %p48
    %p50 = scmp.ne.s32.totalorder %s42, %s44
    %p51 = scmp.eq.s32.totalorder %s13, 1
    %p52 = por %p50, %p51
    %p53 = scmp.ne.s32.totalorder %s44, %s45
    %p54 = scmp.eq.s32.totalorder %s13, 0
    %p55 = por %p53, %p54
    %p56 = scmp.ne.s32.totalorder %s44, %s45
    %p57 = scmp.eq.s32.totalorder %s14, 1
    %p58 = por %p56, %p57
    %p60 = scmp.ne.s32.totalorder %s45, %s59
    %p61 = scmp.eq.s32.totalorder %s14, 0
    %p62 = por %p60, %p61
    %s63 = ssub.s32 %s8, %s15
    %p64 = scmp.eq.s32.totalorder %s63, 0
    %s66 = sadd.s32 %s65, 1
    %s67 = scalar_select %p64, %s65, %s66
    %p70 = pneg %p64
    %p71 = scmp.eq.s32.totalorder %s8, 1
    %p72 = por %p70, %p71
    %p73 = scmp.ne.s32.totalorder %s65, %s68
    %p74 = scmp.eq.s32.totalorder %s8, 0
    %p75 = por %p73, %p74
    %p76 = scmp.ne.s32.totalorder %s65, %s68
    %p77 = scmp.eq.s32.totalorder %s13, 1
    %p78 = por %p76, %p77
    %p79 = scmp.ne.s32.totalorder %s68, %s69
    %p80 = scmp.eq.s32.totalorder %s13, 0
    %p81 = por %p79, %p80
    %p82 = scmp.ne.s32.totalorder %s68, %s69
    %p83 = scmp.eq.s32.totalorder %s14, 1
    %p84 = por %p82, %p83
    %p86 = scmp.ne.s32.totalorder %s69, %s85
    %p87 = scmp.eq.s32.totalorder %s14, 0
    %p88 = por %p86, %p87
    %p89 = scmp.le.s32.totalorder 1, %s8
    %p90 = scmp.lt.s32.totalorder %s8, 3
    %p91 = pnand %p89, %p90
    %p92 = pneg %p91
    // Predicated region
    $region9: #{decoder_forward.12} parent=5 // pred_check
      _
    $region10: #{decoder_forward.12} parent=5 // pred_check_branch
      %94 = sbr.rel (%p91) target = $region12
    $region11: #{decoder_forward.12} parent=5 // pred_region
      %s95 = ssub.s32 %s8, 1
      // Predicated region
      $region13: #{decoder_forward.12} parent=11 // pred_check
        %p96 = pneg %p55
      $region14: #{decoder_forward.12} parent=11 // pred_check_branch
        %98 = sbr.rel (%p96) target = $region16
      $region15: #{decoder_forward.12} parent=11 // pred_region
        _
      $region16: #{decoder_forward.12} parent=11 // pred_fallthru
        _
    $region12: #{decoder_forward.12} parent=5 // pred_fallthru
      _
    %p99 = scmp.lt.s32.totalorder %s8, 2
    // Predicated region
    $region17: #{decoder_forward.12} parent=5 // pred_check
      %p100 = pneg %p99
    $region18: #{decoder_forward.12} parent=5 // pred_check_branch
      %102 = sbr.rel (%p100) target = $region20
    $region19: #{decoder_forward.12} parent=5 // pred_region
      // Predicated region
      $region21: #{decoder_forward.12} parent=19 // pred_check
        %p103 = pneg %p28
      $region22: #{decoder_forward.12} parent=19 // pred_check_branch
        %105 = sbr.rel (%p103) target = $region24
      $region23: #{decoder_forward.12} parent=19 // pred_region
        %s106 = smul.u32 32, %s8
        %p107 = scmp.lt.s32.totalorder %s106, 63
        %s108 = scalar_select %p107, %s106, 63
        %s109 = smul.addr %s108, 4
        %s110 = scalar_lea.vmem %s0, %s109
        %s111 = smul.u32 32, %s8
      $region24: #{decoder_forward.12} parent=19 // pred_fallthru
        _
    $region20: #{decoder_forward.12} parent=5 // pred_fallthru
      _
    %p112 = scmp.le.s32.totalorder 1, %s8
    %p113 = scmp.lt.s32.totalorder %s8, 3
    %p114 = pnand %p112, %p113
    %p115 = pneg %p114
    // Predicated region
    $region25: #{decoder_forward.12} parent=5 // pred_check
      _
    $region26: #{decoder_forward.12} parent=5 // pred_check_branch
      %117 = sbr.rel (%p114) target = $region28
    $region27: #{decoder_forward.12} parent=5 // pred_region
      %s118 = ssub.s32 %s8, 1
      %s119 = smul.u32 32, %s13
      %p120 = scmp.lt.s32.totalorder %s119, 63
      %s121 = scalar_select %p120, %s119, 63
      %s122 = smul.addr %s121, 4
      %s123 = scalar_lea.vmem %s0, %s122
      %p124 = pneg %p34
      %p125 = pneg %p31
      %p126 = pneg %p55
      %p127 = pneg %p52
      %p128 = pneg %p81
      %p129 = pneg %p78
      %s130 = smul.u32 32, %s13
      %p131 = scmp.lt.s32.totalorder %s130, 63
      %s132 = scalar_select %p131, %s130, 63
      %s133 = smul.addr %s132, 8
      %s134 = scalar_lea.vmem %s2, %s133
      %s135 = smul.u32 32, %s13
      %p136 = scmp.lt.s32.totalorder %s135, 63
      %s137 = scalar_select %p136, %s135, 63
      %s138 = smul.addr %s137, 4
      %s139 = scalar_lea.vmem %s0, %s138
      %s140 = smul.u32 32, %s13
      %s141 = smul.u32 32, %s13
      %p142 = scmp.lt.s32.totalorder %s141, 63
      %s143 = scalar_select %p142, %s141, 63
      %s144 = smul.addr %s143, 8
      %s145 = scalar_lea.vmem %s2, %s144
      %s146 = smul.u32 32, %s13
      %v148 = vld [vmem:[%s139] sm:$0xf]
      %v149 = vld [vmem:[%s139 + $0x4] sm:$0xf]
      %v150 = vld [vmem:[%s139 + $0x8] sm:$0xf]
      %v151 = vld [vmem:[%s139 + $0xc] sm:$0xf]
      %v152 = vld [vmem:[%s139 + $0x10] sm:$0xf]
      %v153 = vld [vmem:[%s139 + $0x14] sm:$0xf]
      %v154 = vld [vmem:[%s139 + $0x18] sm:$0xf]
      %v155 = vld [vmem:[%s139 + $0x1c] sm:$0xf]
      %v156 = vld [vmem:[%s139 + $0x20] sm:$0xf]
      %v157 = vld [vmem:[%s139 + $0x24] sm:$0xf]
      %v158 = vld [vmem:[%s139 + $0x28] sm:$0xf]
      %v159 = vld [vmem:[%s139 + $0x2c] sm:$0xf]
      %v160 = vld [vmem:[%s139 + $0x30] sm:$0xf]
      %v161 = vld [vmem:[%s139 + $0x34] sm:$0xf]
      %v162 = vld [vmem:[%s139 + $0x38] sm:$0xf]
      %v163 = vld [vmem:[%s139 + $0x3c] sm:$0xf]
      %v164 = vld [vmem:[%s139 + $0x40] sm:$0xf]
      %v165 = vld [vmem:[%s139 + $0x44] sm:$0xf]
      %v166 = vld [vmem:[%s139 + $0x48] sm:$0xf]
      %v167 = vld [vmem:[%s139 + $0x4c] sm:$0xf]
      %v168 = vld [vmem:[%s139 + $0x50] sm:$0xf]
      %v169 = vld [vmem:[%s139 + $0x54] sm:$0xf]
      %v170 = vld [vmem:[%s139 + $0x58] sm:$0xf]
      %v171 = vld [vmem:[%s139 + $0x5c] sm:$0xf]
      %v172 = vld [vmem:[%s139 + $0x60] sm:$0xf]
      %v173 = vld [vmem:[%s139 + $0x64] sm:$0xf]
      %v174 = vld [vmem:[%s139 + $0x68] sm:$0xf]
      %v175 = vld [vmem:[%s139 + $0x6c] sm:$0xf]
      %v176 = vld [vmem:[%s139 + $0x70] sm:$0xf]
      %v177 = vld [vmem:[%s139 + $0x74] sm:$0xf]
      %v178 = vld [vmem:[%s139 + $0x78] sm:$0xf]
      %v179 = vld [vmem:[%s139 + $0x7c] sm:$0xf]
      %v180 = vld [vmem:[%s1] sm:$0xf]
      %v213 = vunpack.c.l.b16 %v148
      %v214 = vunpack.c.l.b16 %v149
      %v215 = vunpack.c.l.b16 %v150
      %v216 = vunpack.c.l.b16 %v151
      %v217 = vunpack.c.l.b16 %v152
      %v218 = vunpack.c.l.b16 %v153
      %v219 = vunpack.c.l.b16 %v154
      %v220 = vunpack.c.l.b16 %v155
      %v221 = vunpack.c.l.b16 %v156
      %v222 = vunpack.c.l.b16 %v157
      %v223 = vunpack.c.l.b16 %v158
      %v224 = vunpack.c.l.b16 %v159
      %v225 = vunpack.c.l.b16 %v160
      %v226 = vunpack.c.l.b16 %v161
      %v227 = vunpack.c.l.b16 %v162
      %v228 = vunpack.c.l.b16 %v163
      %v229 = vunpack.c.l.b16 %v164
      %v230 = vunpack.c.l.b16 %v165
      %v231 = vunpack.c.l.b16 %v166
      %v232 = vunpack.c.l.b16 %v167
      %v233 = vunpack.c.l.b16 %v168
      %v234 = vunpack.c.l.b16 %v169
      %v235 = vunpack.c.l.b16 %v170
      %v236 = vunpack.c.l.b16 %v171
      %v237 = vunpack.c.l.b16 %v172
      %v238 = vunpack.c.l.b16 %v173
      %v239 = vunpack.c.l.b16 %v174
      %v240 = vunpack.c.l.b16 %v175
      %v241 = vunpack.c.l.b16 %v176
      %v242 = vunpack.c.l.b16 %v177
      %v243 = vunpack.c.l.b16 %v178
      %v244 = vunpack.c.l.b16 %v179
      %v245 = vpack.c.b16 %v214, %v213
      %v246 = vpack.c.b16 %v216, %v215
      %v247 = vpack.c.b16 %v218, %v217
      %v248 = vpack.c.b16 %v220, %v219
      %v249 = vpack.c.b16 %v222, %v221
      %v250 = vpack.c.b16 %v224, %v223
      %v251 = vpack.c.b16 %v226, %v225
      %v252 = vpack.c.b16 %v228, %v227
      %v253 = vpack.c.b16 %v230, %v229
      %v254 = vpack.c.b16 %v232, %v231
      %v255 = vpack.c.b16 %v234, %v233
      %v256 = vpack.c.b16 %v236, %v235
      %v257 = vpack.c.b16 %v238, %v237
      %v258 = vpack.c.b16 %v240, %v239
      %v259 = vpack.c.b16 %v242, %v241
      %v260 = vpack.c.b16 %v244, %v243
      %vm261 = vcmask 64512
      %v263 = vsel %vm261, %v245, 0
      %v266 = vsel %vm261, %v246, 0
      %v269 = vsel %vm261, %v247, 0
      %v272 = vsel %vm261, %v248, 0
      %v275 = vsel %vm261, %v249, 0
      %v278 = vsel %vm261, %v250, 0
      %v281 = vsel %vm261, %v251, 0
      %v284 = vsel %vm261, %v252, 0
      %v287 = vsel %vm261, %v253, 0
      %v290 = vsel %vm261, %v254, 0
      %v293 = vsel %vm261, %v255, 0
      %v296 = vsel %vm261, %v256, 0
      %v299 = vsel %vm261, %v257, 0
      %v302 = vsel %vm261, %v258, 0
      %v305 = vsel %vm261, %v259, 0
      %v308 = vsel %vm261, %v260, 0
      %vm310 = vcmask 1043456
      %v312 = vsel %vm310, %v180, 0
      %314 = vmatprep.subr.bf16.mxu0 0
      %315 = vmatpush1.bf16.msra.mxu0 %v312
      %316 = vmatprep.subr.bf16.mxu0 0
      %317 = vmatpush1.bf16.msra.mxu0 0
      %318 = vmatprep.subr.bf16.mxu0 0
      %319 = vmatpush1.bf16.msra.mxu0 0
      %320 = vmatprep.subr.bf16.mxu0 0
      %321 = vmatpush1.bf16.msra.mxu0 0
      %322 = vmatprep.subr.bf16.mxu0 0
      %323 = vmatpush1.bf16.msra.mxu0 0
      %324 = vmatprep.subr.bf16.mxu0 0
      %325 = vmatpush1.bf16.msra.mxu0 0
      %326 = vmatprep.subr.bf16.mxu0 0
      %327 = vmatpush1.bf16.msra.mxu0 0
      %328 = vmatprep.subr.bf16.mxu0 0
      %329 = vmatpush1.bf16.msra.mxu0 0
      %330 = vmatprep.subr.bf16.mxu0 0
      %331 = vmatpush1.bf16.msra.mxu0 0
      %332 = vmatprep.subr.bf16.mxu0 0
      %333 = vmatpush1.bf16.msra.mxu0 0
      %334 = vmatprep.subr.bf16.mxu0 0
      %335 = vmatpush1.bf16.msra.mxu0 0
      %336 = vmatprep.subr.bf16.mxu0 0
      %337 = vmatpush1.bf16.msra.mxu0 0
      %338 = vmatprep.subr.bf16.mxu0 0
      %339 = vmatpush1.bf16.msra.mxu0 0
      %340 = vmatprep.subr.bf16.mxu0 0
      %341 = vmatpush1.bf16.msra.mxu0 0
      %342 = vmatprep.subr.bf16.mxu0 0
      %343 = vmatpush1.bf16.msra.mxu0 0
      %344 = vmatprep.subr.bf16.mxu0 0
      %345 = vmatpush1.bf16.msra.mxu0 0
      %346 = vmatprep.mubr.bf16.mxu0 0
      %347 = vmatmul.mubr.bf16.gmra.mrb[0].mxu0 %v263
      %v348 = vpop.f32.mrb[0].mxu0
      %v349 = vadd.f32 0.0, %v348
      %v350 = vpop.f32.mrb[0].mxu0
      %v351 = vpop.f32.mrb[0].mxu0
      %v352 = vadd.f32 0.0, %v351
      %v353 = vpop.f32.mrb[0].mxu0
      %354 = vmatprep.mubr.bf16.mxu0 0
      %355 = vmatmul.mubr.bf16.gmra.mrb[0].mxu0 %v266
      %v356 = vpop.f32.mrb[0].mxu0
      %v357 = vadd.f32 0.0, %v356
      %v358 = vpop.f32.mrb[0].mxu0
      %v359 = vpop.f32.mrb[0].mxu0
      %v360 = vadd.f32 0.0, %v359
      %v361 = vpop.f32.mrb[0].mxu0
      %362 = vmatprep.mubr.bf16.mxu0 0
      %363 = vmatmul.mubr.bf16.gmra.mrb[0].mxu0 %v269
      %v364 = vpop.f32.mrb[0].mxu0
      %v365 = vadd.f32 0.0, %v364
      %v366 = vpop.f32.mrb[0].mxu0
      %v367 = vpop.f32.mrb[0].mxu0
      %v368 = vadd.f32 0.0, %v367
      %v369 = vpop.f32.mrb[0].mxu0
      %370 = vmatprep.mubr.bf16.mxu0 0
      %371 = vmatmul.mubr.bf16.gmra.mrb[0].mxu0 %v272
      %v372 = vpop.f32.mrb[0].mxu0
      %v373 = vadd.f32 0.0, %v372
      %v374 = vpop.f32.mrb[0].mxu0
      %v375 = vpop.f32.mrb[0].mxu0
      %v376 = vadd.f32 0.0, %v375
      %v377 = vpop.f32.mrb[0].mxu0
      %378 = vmatprep.mubr.bf16.mxu0 0
      %379 = vmatmul.mubr.bf16.gmra.mrb[0].mxu0 %v275
      %v380 = vpop.f32.mrb[0].mxu0
      %v381 = vadd.f32 0.0, %v380
      %v382 = vpop.f32.mrb[0].mxu0
      %v383 = vpop.f32.mrb[0].mxu0
      %v384 = vadd.f32 0.0, %v383
      %v385 = vpop.f32.mrb[0].mxu0
      %386 = vmatprep.mubr.bf16.mxu0 0
      %387 = vmatmul.mubr.bf16.gmra.mrb[0].mxu0 %v278
      %v388 = vpop.f32.mrb[0].mxu0
      %v389 = vadd.f32 0.0, %v388
      %v390 = vpop.f32.mrb[0].mxu0
      %v391 = vpop.f32.mrb[0].mxu0
      %v392 = vadd.f32 0.0, %v391
      %v393 = vpop.f32.mrb[0].mxu0
      %394 = vmatprep.mubr.bf16.mxu0 0
      %395 = vmatmul.mubr.bf16.gmra.mrb[0].mxu0 %v281
      %v396 = vpop.f32.mrb[0].mxu0
      %v397 = vadd.f32 0.0, %v396
      %v398 = vpop.f32.mrb[0].mxu0
      %v399 = vpop.f32.mrb[0].mxu0
      %v400 = vadd.f32 0.0, %v399
      %v401 = vpop.f32.mrb[0].mxu0
      %402 = vmatprep.mubr.bf16.mxu0 0
      %403 = vmatmul.mubr.bf16.gmra.mrb[0].mxu0 %v284
      %v404 = vpop.f32.mrb[0].mxu0
      %v405 = vadd.f32 0.0, %v404
      %v406 = vpop.f32.mrb[0].mxu0
      %v407 = vpop.f32.mrb[0].mxu0
      %v408 = vadd.f32 0.0, %v407
      %v409 = vpop.f32.mrb[0].mxu0
      %410 = vmatprep.mubr.bf16.mxu0 0
      %411 = vmatmul.mubr.bf16.gmra.mrb[0].mxu0 %v287
      %v412 = vpop.f32.mrb[0].mxu0
      %v413 = vadd.f32 0.0, %v412
      %v414 = vpop.f32.mrb[0].mxu0
      %v415 = vpop.f32.mrb[0].mxu0
      %v416 = vadd.f32 0.0, %v415
      %v417 = vpop.f32.mrb[0].mxu0
      %418 = vmatprep.mubr.bf16.mxu0 0
      %419 = vmatmul.mubr.bf16.gmra.mrb[0].mxu0 %v290
      %v420 = vpop.f32.mrb[0].mxu0
      %v421 = vadd.f32 0.0, %v420
      %v422 = vpop.f32.mrb[0].mxu0
      %v423 = vpop.f32.mrb[0].mxu0
      %v424 = vadd.f32 0.0, %v423
      %v425 = vpop.f32.mrb[0].mxu0
      %426 = vmatprep.mubr.bf16.mxu0 0
      %427 = vmatmul.mubr.bf16.gmra.mrb[0].mxu0 %v293
      %v428 = vpop.f32.mrb[0].mxu0
      %v429 = vadd.f32 0.0, %v428
      %v430 = vpop.f32.mrb[0].mxu0
      %v431 = vpop.f32.mrb[0].mxu0
      %v432 = vadd.f32 0.0, %v431
      %v433 = vpop.f32.mrb[0].mxu0
      %434 = vmatprep.mubr.bf16.mxu0 0
      %435 = vmatmul.mubr.bf16.gmra.mrb[0].mxu0 %v296
      %v436 = vpop.f32.mrb[0].mxu0
      %v437 = vadd.f32 0.0, %v436
      %v438 = vpop.f32.mrb[0].mxu0
      %v439 = vpop.f32.mrb[0].mxu0
      %v440 = vadd.f32 0.0, %v439
      %v441 = vpop.f32.mrb[0].mxu0
      %442 = vmatprep.mubr.bf16.mxu0 0
      %443 = vmatmul.mubr.bf16.gmra.mrb[0].mxu0 %v299
      %v444 = vpop.f32.mrb[0].mxu0
      %v445 = vadd.f32 0.0, %v444
      %v446 = vpop.f32.mrb[0].mxu0
      %v447 = vpop.f32.mrb[0].mxu0
      %v448 = vadd.f32 0.0, %v447
      %v449 = vpop.f32.mrb[0].mxu0
      %450 = vmatprep.mubr.bf16.mxu0 0
      %451 = vmatmul.mubr.bf16.gmra.mrb[0].mxu0 %v302
      %v452 = vpop.f32.mrb[0].mxu0
      %v453 = vadd.f32 0.0, %v452
      %v454 = vpop.f32.mrb[0].mxu0
      %v455 = vpop.f32.mrb[0].mxu0
      %v456 = vadd.f32 0.0, %v455
      %v457 = vpop.f32.mrb[0].mxu0
      %458 = vmatprep.mubr.bf16.mxu0 0
      %459 = vmatmul.mubr.bf16.gmra.mrb[0].mxu0 %v305
      %v460 = vpop.f32.mrb[0].mxu0
      %v461 = vadd.f32 0.0, %v460
      %v462 = vpop.f32.mrb[0].mxu0
      %v463 = vpop.f32.mrb[0].mxu0
      %v464 = vadd.f32 0.0, %v463
      %v465 = vpop.f32.mrb[0].mxu0
      %466 = vmatprep.mubr.bf16.mxu0 0
      %467 = vmatmul.mubr.bf16.gmra.mrb[0].mxu0 %v308
      %v468 = vpop.f32.mrb[0].mxu0
      %v469 = vadd.f32 0.0, %v468
      %v470 = vpop.f32.mrb[0].mxu0
      %v471 = vpop.f32.mrb[0].mxu0
      %v472 = vadd.f32 0.0, %v471
      %v473 = vpop.f32.mrb[0].mxu0
      %474 = vdwg.mxu0
      %vm475 = vcmask 523264
      %476 = vst.msk [vmem:[%s145] sm:$0xff] %vm475, %v349
      %477 = vst.msk [vmem:[%s145 + $0x8] sm:$0xff] %vm475, %v352
      %478 = vst.msk [vmem:[%s145 + $0x10] sm:$0xff] %vm475, %v357
      %479 = vst.msk [vmem:[%s145 + $0x18] sm:$0xff] %vm475, %v360
      %480 = vst.msk [vmem:[%s145 + $0x20] sm:$0xff] %vm475, %v365
      %481 = vst.msk [vmem:[%s145 + $0x28] sm:$0xff] %vm475, %v368
      %482 = vst.msk [vmem:[%s145 + $0x30] sm:$0xff] %vm475, %v373
      %483 = vst.msk [vmem:[%s145 + $0x38] sm:$0xff] %vm475, %v376
      %484 = vst.msk [vmem:[%s145 + $0x40] sm:$0xff] %vm475, %v381
      %485 = vst.msk [vmem:[%s145 + $0x48] sm:$0xff] %vm475, %v384
      %486 = vst.msk [vmem:[%s145 + $0x50] sm:$0xff] %vm475, %v389
      %487 = vst.msk [vmem:[%s145 + $0x58] sm:$0xff] %vm475, %v392
      %488 = vst.msk [vmem:[%s145 + $0x60] sm:$0xff] %vm475, %v397
      %489 = vst.msk [vmem:[%s145 + $0x68] sm:$0xff] %vm475, %v400
      %490 = vst.msk [vmem:[%s145 + $0x70] sm:$0xff] %vm475, %v405
      %491 = vst.msk [vmem:[%s145 + $0x78] sm:$0xff] %vm475, %v408
      %492 = vst.msk [vmem:[%s145 + $0x80] sm:$0xff] %vm475, %v413
      %493 = vst.msk [vmem:[%s145 + $0x88] sm:$0xff] %vm475, %v416
      %494 = vst.msk [vmem:[%s145 + $0x90] sm:$0xff] %vm475, %v421
      %495 = vst.msk [vmem:[%s145 + $0x98] sm:$0xff] %vm475, %v424
      %496 = vst.msk [vmem:[%s145 + $0xa0] sm:$0xff] %vm475, %v429
      %497 = vst.msk [vmem:[%s145 + $0xa8] sm:$0xff] %vm475, %v432
      %498 = vst.msk [vmem:[%s145 + $0xb0] sm:$0xff] %vm475, %v437
      %499 = vst.msk [vmem:[%s145 + $0xb8] sm:$0xff] %vm475, %v440
      %500 = vst.msk [vmem:[%s145 + $0xc0] sm:$0xff] %vm475, %v445
      %501 = vst.msk [vmem:[%s145 + $0xc8] sm:$0xff] %vm475, %v448
      %502 = vst.msk [vmem:[%s145 + $0xd0] sm:$0xff] %vm475, %v453
      %503 = vst.msk [vmem:[%s145 + $0xd8] sm:$0xff] %vm475, %v456
      %504 = vst.msk [vmem:[%s145 + $0xe0] sm:$0xff] %vm475, %v461
      %505 = vst.msk [vmem:[%s145 + $0xe8] sm:$0xff] %vm475, %v464
      %506 = vst.msk [vmem:[%s145 + $0xf0] sm:$0xff] %vm475, %v469
      %507 = vst.msk [vmem:[%s145 + $0xf8] sm:$0xff] %vm475, %v472
      %s508 = smul.u32 32, %s13
      %p509 = scmp.lt.s32.totalorder %s508, 63
      %s510 = scalar_select %p509, %s508, 63
      %s511 = smul.addr %s510, 8
      %s512 = scalar_lea.vmem %s2, %s511
      // Predicated region
      $region29: #{decoder_forward.12} parent=27 // pred_check
        %p513 = pneg %p78
      $region30: #{decoder_forward.12} parent=27 // pred_check_branch
        %515 = sbr.rel (%p513) target = $region32
      $region31: #{decoder_forward.12} parent=27 // pred_region
        %s516 = smul.u32 32, %s13
      $region32: #{decoder_forward.12} parent=27 // pred_fallthru
        _
    $region28: #{decoder_forward.12} parent=5 // pred_fallthru
      _
    %p517 = scmp.le.s32.totalorder 2, %s8
    // Predicated region
    $region33: #{decoder_forward.12} parent=5 // pred_check
      %p518 = pneg %p517
    $region34: #{decoder_forward.12} parent=5 // pred_check_branch
      %520 = sbr.rel (%p518) target = $region36
    $region35: #{decoder_forward.12} parent=5 // pred_region
      %s521 = ssub.s32 %s8, 2
      // Predicated region
      $region37: #{decoder_forward.12} parent=35 // pred_check
        %p522 = pneg %p84
      $region38: #{decoder_forward.12} parent=35 // pred_check_branch
        %524 = sbr.rel (%p522) target = $region40
      $region39: #{decoder_forward.12} parent=35 // pred_region
        %s525 = smul.u32 32, %s14
        %p526 = scmp.lt.s32.totalorder %s525, 63
        %s527 = scalar_select %p526, %s525, 63
        %s528 = smul.addr %s527, 8
        %s529 = scalar_lea.vmem %s2, %s528
      $region40: #{decoder_forward.12} parent=35 // pred_fallthru
        _
    $region36: #{decoder_forward.12} parent=5 // pred_fallthru
      _
  $region6: #{decoder_forward.12} parent=0 // loop_footer
    %s12 = sadd.s32 1, %s8
  $region7: #{decoder_forward.12} parent=0 // loop_footer_branch
    %7 = sbr.rel target = $region3
  $region8: #{decoder_forward.12} parent=0 // loop_exit
    _

// kernel: tile.33
$region0: #{tile.33}
  #allocation0 [shape = 's32[1]{0}', space=sflag, size = 0x4, scoped, tag = 'scoped memory for tile.33']
  %s0 = inlined_call_operand.vmem [shape: f32[4], index: 0, kind: input, shape index: {}]
  %s1 = inlined_call_operand.vmem [shape: f32[31,4], index: 1, kind: output, shape index: {}]
  // Predicated region
  $region2: #{tile.33} parent=0 // pred_check
    _
  $region3: #{tile.33} parent=0 // pred_check_branch
    %3 = sbr.rel (0) target = $region5
  $region4: #{tile.33} parent=0 // pred_region
    _
  $region5: #{tile.33} parent=0 // pred_fallthru
    _
  %v4 = vld [vmem:[%s0] ss:$0 sm:$0xff]
  %5 = vst [vmem:[%s1] sm:$0xff] %v4
  %s6 = scalar_lea.vmem %s1, 8
  %7 = vst [vmem:[%s6] sm:$0xff] %v4
  %s8 = scalar_lea.vmem %s1, 16
  %9 = vst [vmem:[%s8] sm:$0xff] %v4
  %s10 = scalar_lea.vmem %s1, 24
  %11 = vst [vmem:[%s10] sm:$0xff] %v4

// kernel: tile.34
$region0: #{tile.34}
  %s0 = inlined_call_operand.vmem [shape: f32[31,4], index: 0, kind: input, shape index: {}]
  %s1 = inlined_call_operand.vmem [shape: f32[1,124], index: 1, kind: output, shape index: {}]
  $region1: #{tile.34} parent=0
    #allocation0 [shape = 'u8[4096]{0}', space=vmem, size = 0x1000, scoped, tag = 'scoped mem for output reshape']
    %v2 = vld [vmem:[%s0] sm:$0x1]
    %vm3 = vcmask 31744
    %4 = vst.msk [vmem:[#allocation0] sm:$0x1] %vm3, %v2
    %s5 = scalar_lea.vmem %s0, 30
    %v6 = vld [vmem:[%s5] sm:$0x1]
    %7 = vrot.lane.b32.xlu0 %v6, 120
    %v8 = vpop.permute.xlu0 %7
    %vm9 = vcmask 1015744
    %10 = vst.msk [vmem:[#allocation0] sm:$0x1] %vm9, %v8
    %s11 = scalar_lea.vmem %s0, 29
    %v12 = vld [vmem:[%s11] sm:$0x1]
    %13 = vrot.lane.b32.xlu0 %v12, 116
    %v14 = vpop.permute.xlu0 %13
    %vm15 = vcmask 982944
    %16 = vst.msk [vmem:[#allocation0] sm:$0x1] %vm15, %v14
    %s17 = scalar_lea.vmem %s0, 28
    %v18 = vld [vmem:[%s17] sm:$0x1]
    %19 = vrot.lane.b32.xlu0 %v18, 112
    %v20 = vpop.permute.xlu0 %19
    %vm21 = vcmask 950144
    %22 = vst.msk [vmem:[#allocation0] sm:$0x1] %vm21, %v20
    %s23 = scalar_lea.vmem %s0, 27
    %v24 = vld [vmem:[%s23] sm:$0x1]
    %25 = vrot.lane.b32.xlu0 %v24, 108
    %v26 = vpop.permute.xlu0 %25
    %vm27 = vcmask 917344
    %28 = vst.msk [vmem:[#allocation0] sm:$0x1] %vm27, %v26
    %s29 = scalar_lea.vmem %s0, 26
    %v30 = vld [vmem:[%s29] sm:$0x1]
    %31 = vrot.lane.b32.xlu0 %v30, 104
    %v32 = vpop.permute.xlu0 %31
    %vm33 = vcmask 884544
    %34 = vst.msk [vmem:[#allocation0] sm:$0x1] %vm33, %v32
    %s35 = scalar_lea.vmem %s0, 25
    %v36 = vld [vmem:[%s35] sm:$0x1]
    %37 = vrot.lane.b32.xlu0 %v36, 100
    %v38 = vpop.permute.xlu0 %37
    %vm39 = vcmask 851744
    %40 = vst.msk [vmem:[#allocation0] sm:$0x1] %vm39, %v38
    %s41 = scalar_lea.vmem %s0, 24
    %v42 = vld [vmem:[%s41] sm:$0x1]
    %43 = vrot.lane.b32.xlu0 %v42, 96
    %v44 = vpop.permute.xlu0 %43
    %vm45 = vcmask 818944
    %46 = vst.msk [vmem:[#allocation0] sm:$0x1] %vm45, %v44
    %s47 = scalar_lea.vmem %s0, 23
    %v48 = vld [vmem:[%s47] sm:$0x1]
    %49 = vrot.lane.b32.xlu0 %v48, 92
    %v50 = vpop.permute.xlu0 %49
    %vm51 = vcmask 786144
    %52 = vst.msk [vmem:[#allocation0] sm:$0x1] %vm51, %v50
    %s53 = scalar_lea.vmem %s0, 22
    %v54 = vld [vmem:[%s53] sm:$0x1]
    %55 = vrot.lane.b32.xlu0 %v54, 88
    %v56 = vpop.permute.xlu0 %55
    %vm57 = vcmask 753344
    %58 = vst.msk [vmem:[#allocation0] sm:$0x1] %vm57, %v56
    %s59 = scalar_lea.vmem %s0, 21
    %v60 = vld [vmem:[%s59] sm:$0x1]
    %61 = vrot.lane.b32.xlu0 %v60, 84
    %v62 = vpop.permute.xlu0 %61
    %vm63 = vcmask 720544
    %64 = vst.msk [vmem:[#allocation0] sm:$0x1] %vm63, %v62
    %s65 = scalar_lea.vmem %s0, 20
    %v66 = vld [vmem:[%s65] sm:$0x1]
    %67 = vrot.lane.b32.xlu0 %v66, 80
    %v68 = vpop.permute.xlu0 %67
    %vm69 = vcmask 687744
    %70 = vst.msk [vmem:[#allocation0] sm:$0x1] %vm69, %v68
    %s71 = scalar_lea.vmem %s0, 19
    %v72 = vld [vmem:[%s71] sm:$0x1]
    %73 = vrot.lane.b32.xlu0 %v72, 76
    %v74 = vpop.permute.xlu0 %73
    %vm75 = vcmask 654944
    %76 = vst.msk [vmem:[#allocation0] sm:$0x1] %vm75, %v74
    %s77 = scalar_lea.vmem %s0, 18
    %v78 = vld [vmem:[%s77] sm:$0x1]
    %79 = vrot.lane.b32.xlu0 %v78, 72
    %v80 = vpop.permute.xlu0 %79
    %vm81 = vcmask 622144
    %82 = vst.msk [vmem:[#allocation0] sm:$0x1] %vm81, %v80
    %s83 = scalar_lea.vmem %s0, 17
    %v84 = vld [vmem:[%s83] sm:$0x1]
    %85 = vrot.lane.b32.xlu0 %v84, 68
    %v86 = vpop.permute.xlu0 %85
    %vm87 = vcmask 589344
    %88 = vst.msk [vmem:[#allocation0] sm:$0x1] %vm87, %v86
    %s89 = scalar_lea.vmem %s0, 16
    %v90 = vld [vmem:[%s89] sm:$0x1]
    %91 = vrot.lane.b32.xlu0 %v90, 64
    %v92 = vpop.permute.xlu0 %91
    %vm93 = vcmask 556544
    %94 = vst.msk [vmem:[#allocation0] sm:$0x1] %vm93, %v92
    %s95 = scalar_lea.vmem %s0, 15
    %v96 = vld [vmem:[%s95] sm:$0x1]
    %97 = vrot.lane.b32.xlu0 %v96, 60
    %v98 = vpop.permute.xlu0 %97
    %vm99 = vcmask 523744
    %100 = vst.msk [vmem:[#allocation0] sm:$0x1] %vm99, %v98
    %s101 = scalar_lea.vmem %s0, 14
    %v102 = vld [vmem:[%s101] sm:$0x1]
    %103 = vrot.lane.b32.xlu0 %v102, 56
    %v104 = vpop.permute.xlu0 %103
    %vm105 = vcmask 490944
    %106 = vst.msk [vmem:[#allocation0] sm:$0x1] %vm105, %v104
    %s107 = scalar_lea.vmem %s0, 13
    %v108 = vld [vmem:[%s107] sm:$0x1]
    %109 = vrot.lane.b32.xlu0 %v108, 52
    %v110 = vpop.permute.xlu0 %109
    %vm111 = vcmask 458144
    %112 = vst.msk [vmem:[#allocation0] sm:$0x1] %vm111, %v110
    %s113 = scalar_lea.vmem %s0, 12
    %v114 = vld [vmem:[%s113] sm:$0x1]
    %115 = vrot.lane.b32.xlu0 %v114, 48
    %v116 = vpop.permute.xlu0 %115
    %vm117 = vcmask 425344
    %118 = vst.msk [vmem:[#allocation0] sm:$0x1] %vm117, %v116
    %s119 = scalar_lea.vmem %s0, 11
    %v120 = vld [vmem:[%s119] sm:$0x1]
    %121 = vrot.lane.b32.xlu0 %v120, 44
    %v122 = vpop.permute.xlu0 %121
    %vm123 = vcmask 392544
    %124 = vst.msk [vmem:[#allocation0] sm:$0x1] %vm123, %v122
    %s125 = scalar_lea.vmem %s0, 10
    %v126 = vld [vmem:[%s125] sm:$0x1]
    %127 = vrot.lane.b32.xlu0 %v126, 40
    %v128 = vpop.permute.xlu0 %127
    %vm129 = vcmask 359744
    %130 = vst.msk [vmem:[#allocation0] sm:$0x1] %vm129, %v128
    %s131 = scalar_lea.vmem %s0, 9
    %v132 = vld [vmem:[%s131] sm:$0x1]
    %133 = vrot.lane.b32.xlu0 %v132, 36
    %v134 = vpop.permute.xlu0 %133
    %vm135 = vcmask 326944
    %136 = vst.msk [vmem:[#allocation0] sm:$0x1] %vm135, %v134
    %s137 = scalar_lea.vmem %s0, 8
    %v138 = vld [vmem:[%s137] sm:$0x1]
    %139 = vrot.lane.b32.xlu0 %v138, 32
    %v140 = vpop.permute.xlu0 %139
    %vm141 = vcmask 294144
    %142 = vst.msk [vmem:[#allocation0] sm:$0x1] %vm141, %v140
    %s143 = scalar_lea.vmem %s0, 7
    %v144 = vld [vmem:[%s143] sm:$0x1]
    %145 = vrot.lane.b32.xlu0 %v144, 28
    %v146 = vpop.permute.xlu0 %145
    %vm147 = vcmask 261344
    %148 = vst.msk [vmem:[#allocation0] sm:$0x1] %vm147, %v146
    %s149 = scalar_lea.vmem %s0, 6
    %v150 = vld [vmem:[%s149] sm:$0x1]
    %151 = vrot.lane.b32.xlu0 %v150, 24
    %v152 = vpop.permute.xlu0 %151
    %vm153 = vcmask 228544
    %154 = vst.msk [vmem:[#allocation0] sm:$0x1] %vm153, %v152
    %s155 = scalar_lea.vmem %s0, 5
    %v156 = vld [vmem:[%s155] sm:$0x1]
    %157 = vrot.lane.b32.xlu0 %v156, 20
    %v158 = vpop.permute.xlu0 %157
    %vm159 = vcmask 195744
    %160 = vst.msk [vmem:[#allocation0] sm:$0x1] %vm159, %v158
    %s161 = scalar_lea.vmem %s0, 4
    %v162 = vld [vmem:[%s161] sm:$0x1]
    %163 = vrot.lane.b32.xlu0 %v162, 16
    %v164 = vpop.permute.xlu0 %163
    %vm165 = vcmask 162944
    %166 = vst.msk [vmem:[#allocation0] sm:$0x1] %vm165, %v164
    %s167 = scalar_lea.vmem %s0, 3
    %v168 = vld [vmem:[%s167] sm:$0x1]
    %169 = vrot.lane.b32.xlu0 %v168, 12
    %v170 = vpop.permute.xlu0 %169
    %vm171 = vcmask 130144
    %172 = vst.msk [vmem:[#allocation0] sm:$0x1] %vm171, %v170
    %s173 = scalar_lea.vmem %s0, 2
    %v174 = vld [vmem:[%s173] sm:$0x1]
    %175 = vrot.lane.b32.xlu0 %v174, 8
    %v176 = vpop.permute.xlu0 %175
    %vm177 = vcmask 97344
    %178 = vst.msk [vmem:[#allocation0] sm:$0x1] %vm177, %v176
    %s179 = scalar_lea.vmem %s0, 1
    %v180 = vld [vmem:[%s179] sm:$0x1]
    %181 = vrot.lane.b32.xlu0 %v180, 4
    %v182 = vpop.permute.xlu0 %181
    %vm183 = vcmask 64544
    %184 = vst.msk [vmem:[#allocation0] sm:$0x1] %vm183, %v182
    %s186 = sshllo.u32 0, 1
    %v188 = vld [vmem:[#allocation0] sm:%s186]
    %s189 = sshllo.u32 0, 1
    %190 = vst [vmem:[%s1] sm:%s189] %v188

// kernel: decoder_forward.13
$region0: #{decoder_forward.13}
  #allocation0 [shape = 'u32[]', space=smem, size = 0x4, offset = 0x4, fixed_abs, tag = 'smem constant byte address 0x4 - core index']
  #allocation1 [shape = 'u32[144,128]{1,0:T(1,128)}', space=vmem, size = 0x12000, scoped, tag = 'internal scratch']
  %s0 = inlined_call_operand.vmem [shape: f32[64,124], index: 0, kind: input, shape index: {}]
  %s1 = inlined_call_operand.vmem [shape: f32[1,124], index: 1, kind: input, shape index: {}]
  %s2 = inlined_call_operand.vmem [shape: f32[64,124], index: 2, kind: output, shape index: {}]
  %s3 = sld [smem:[#allocation0]]
  $region18: #{decoder_forward.13} parent=0
    _
  %s5 = ssub.s32 1, %s3
  %s6 = scalar_select 0, %s5, %s3
  // Predicated region
  $region2: #{decoder_forward.13} parent=0 // pred_check
    _
  $region3: #{decoder_forward.13} parent=0 // pred_check_branch
    %8 = sbr.rel (0) target = $region5
  $region4: #{decoder_forward.13} parent=0 // pred_region
    _
  $region5: #{decoder_forward.13} parent=0 // pred_fallthru
    _
  // Predicated region
  $region6: #{decoder_forward.13} parent=0 // pred_check
    _
  $region7: #{decoder_forward.13} parent=0 // pred_check_branch
    %10 = sbr.rel (0) target = $region9
  $region8: #{decoder_forward.13} parent=0 // pred_region
    _
  $region9: #{decoder_forward.13} parent=0 // pred_fallthru
    _
  %v11 = vld [vmem:[%s0] sm:$0xff]
  %v12 = vld [vmem:[%s0 + $0x8] sm:$0xff]
  %v13 = vld [vmem:[%s0 + $0x10] sm:$0xff]
  %v14 = vld [vmem:[%s0 + $0x18] sm:$0xff]
  %v15 = vld [vmem:[%s0 + $0x20] sm:$0xff]
  %v16 = vld [vmem:[%s0 + $0x28] sm:$0xff]
  %v17 = vld [vmem:[%s0 + $0x30] sm:$0xff]
  %v18 = vld [vmem:[%s0 + $0x38] sm:$0xff]
  %v19 = vld [vmem:[%s1] sm:$0x1]
  %v21 = vlaneseq
  %v22 = vshrl.u32 %v21, 7
  %v23 = vsub.s32 0, %v22
  %v24 = vrot.slane %v19, %v23
  %v26 = vadd.f32 %v11, %v24
  %v27 = vadd.f32 %v12, %v24
  %v28 = vadd.f32 %v13, %v24
  %v29 = vadd.f32 %v14, %v24
  %v30 = vadd.f32 %v15, %v24
  %v31 = vadd.f32 %v16, %v24
  %v32 = vadd.f32 %v17, %v24
  %v33 = vadd.f32 %v18, %v24
  %vm34 = vcmp.ge.f32.partialorder %v26, 0.0
  %vm35 = vcmp.ge.f32.partialorder %v27, 0.0
  %vm36 = vcmp.ge.f32.partialorder %v28, 0.0
  %vm37 = vcmp.ge.f32.partialorder %v29, 0.0
  %vm38 = vcmp.ge.f32.partialorder %v30, 0.0
  %vm39 = vcmp.ge.f32.partialorder %v31, 0.0
  %vm40 = vcmp.ge.f32.partialorder %v32, 0.0
  %vm41 = vcmp.ge.f32.partialorder %v33, 0.0
  %v42 = vmul.f32 %v26, 0.2
  %v43 = vmul.f32 %v27, 0.2
  %v44 = vmul.f32 %v28, 0.2
  %v45 = vmul.f32 %v29, 0.2
  %v46 = vmul.f32 %v30, 0.2
  %v47 = vmul.f32 %v31, 0.2
  %v48 = vmul.f32 %v32, 0.2
  %v49 = vmul.f32 %v33, 0.2
  %v50 = vsel %vm34, %v26, %v42
  %v51 = vsel %vm35, %v27, %v43
  %v52 = vsel %vm36, %v28, %v44
  %v53 = vsel %vm37, %v29, %v45
  %v54 = vsel %vm38, %v30, %v46
  %v55 = vsel %vm39, %v31, %v47
  %v56 = vsel %vm40, %v32, %v48
  %v57 = vsel %vm41, %v33, %v49
  %vm58 = vcmask 1014784
  %59 = vst.msk [vmem:[%s2] sm:$0xff] %vm58, %v50
  %60 = vst.msk [vmem:[%s2 + $0x8] sm:$0xff] %vm58, %v51
  %61 = vst.msk [vmem:[%s2 + $0x10] sm:$0xff] %vm58, %v52
  %62 = vst.msk [vmem:[%s2 + $0x18] sm:$0xff] %vm58, %v53
  %63 = vst.msk [vmem:[%s2 + $0x20] sm:$0xff] %vm58, %v54
  %64 = vst.msk [vmem:[%s2 + $0x28] sm:$0xff] %vm58, %v55
  %65 = vst.msk [vmem:[%s2 + $0x30] sm:$0xff] %vm58, %v56
  %66 = vst.msk [vmem:[%s2 + $0x38] sm:$0xff] %vm58, %v57
  // Predicated region
  $region10: #{decoder_forward.13} parent=0 // pred_check
    _
  $region11: #{decoder_forward.13} parent=0 // pred_check_branch
    %68 = sbr.rel (0) target = $region13
  $region12: #{decoder_forward.13} parent=0 // pred_region
    _
  $region13: #{decoder_forward.13} parent=0 // pred_fallthru
    _
  // Predicated region
  $region14: #{decoder_forward.13} parent=0 // pred_check
    _
  $region15: #{decoder_forward.13} parent=0 // pred_check_branch
    %70 = sbr.rel (0) target = $region17
  $region16: #{decoder_forward.13} parent=0 // pred_region
    _
  $region17: #{decoder_forward.13} parent=0 // pred_fallthru
    _

// kernel: decoder_forward.14
$region0: #{decoder_forward.14}
  #allocation0 [shape = 'u32[]', space=smem, size = 0x4, offset = 0x4, fixed_abs, tag = 'smem constant byte address 0x4 - core index']
  #allocation1 [shape = 'u32[144,128]{1,0:T(1,128)}', space=vmem, size = 0x12000, scoped, tag = 'internal scratch']
  %s0 = inlined_call_operand.vmem [shape: bf16[2048,4], index: 0, kind: input, shape index: {}]
  %s1 = inlined_call_operand.vmem [shape: bf16[4,48], index: 1, kind: input, shape index: {}]
  %s2 = inlined_call_operand.vmem [shape: f32[2048,48], index: 2, kind: output, shape index: {}]
  %s3 = sld [smem:[#allocation0]]
  $region41: #{decoder_forward.14} parent=0
    _
  %s5 = ssub.s32 1, %s3
  %s6 = scalar_select 0, %s5, %s3
  loop: start=0, step=1, limit=10
  $region2: #{decoder_forward.14} parent=0 // loop_pre_header
    _
  $region3: #{decoder_forward.14} parent=0 // loop_header
    %s8 = sphi 0, %s12
    %p9 = scmp.ge.s32.totalorder %s8, 10
    %s18 = sphi 0, %s20
    %s21 = sphi 0, %s18
    %s22 = sphi 0, %s21
    %s38 = sphi 0, %s22
    %s42 = sphi 0, %s42
    %s44 = sphi 0, %s42
    %s45 = sphi 0, %s44
    %s59 = sphi 0, %s45
    %s65 = sphi 0, %s67
    %s68 = sphi 0, %s65
    %s69 = sphi 0, %s68
    %s85 = sphi 0, %s69
  $region4: #{decoder_forward.14} parent=0 // loop_header_branch
    %11 = sbr.rel (%p9) target = $region8
  $region5: #{decoder_forward.14} parent=0 // loop_body
    %s13 = ssub.s32 %s8, 1
    %s14 = ssub.s32 %s8, 2
    %s15 = sadd.s32 %s8, 1
    %s16 = ssub.s32 %s8, %s15
    %p17 = scmp.eq.s32.totalorder %s16, 0
    %s19 = sadd.s32 %s18, 1
    %s20 = scalar_select %p17, %s18, %s19
    %p23 = pneg %p17
    %p24 = scmp.eq.s32.totalorder %s8, 7
    %p25 = por %p23, %p24
    %p26 = scmp.ne.s32.totalorder %s18, %s21
    %p27 = scmp.eq.s32.totalorder %s8, 0
    %p28 = por %p26, %p27
    %p29 = scmp.ne.s32.totalorder %s18, %s21
    %p30 = scmp.eq.s32.totalorder %s13, 7
    %p31 = por %p29, %p30
    %p32 = scmp.ne.s32.totalorder %s21, %s22
    %p33 = scmp.eq.s32.totalorder %s13, 0
    %p34 = por %p32, %p33
    %p35 = scmp.ne.s32.totalorder %s21, %s22
    %p36 = scmp.eq.s32.totalorder %s14, 7
    %p37 = por %p35, %p36
    %p39 = scmp.ne.s32.totalorder %s22, %s38
    %p40 = scmp.eq.s32.totalorder %s14, 0
    %p41 = por %p39, %p40
    %s43 = sadd.s32 %s42, 1
    %p46 = scmp.eq.s32.totalorder %s8, 7
    %p47 = scmp.ne.s32.totalorder %s42, %s44
    %p48 = scmp.eq.s32.totalorder %s8, 0
    %p49 = por %p47, %p48
    %p50 = scmp.ne.s32.totalorder %s42, %s44
    %p51 = scmp.eq.s32.totalorder %s13, 7
    %p52 = por %p50, %p51
    %p53 = scmp.ne.s32.totalorder %s44, %s45
    %p54 = scmp.eq.s32.totalorder %s13, 0
    %p55 = por %p53, %p54
    %p56 = scmp.ne.s32.totalorder %s44, %s45
    %p57 = scmp.eq.s32.totalorder %s14, 7
    %p58 = por %p56, %p57
    %p60 = scmp.ne.s32.totalorder %s45, %s59
    %p61 = scmp.eq.s32.totalorder %s14, 0
    %p62 = por %p60, %p61
    %s63 = ssub.s32 %s8, %s15
    %p64 = scmp.eq.s32.totalorder %s63, 0
    %s66 = sadd.s32 %s65, 1
    %s67 = scalar_select %p64, %s65, %s66
    %p70 = pneg %p64
    %p71 = scmp.eq.s32.totalorder %s8, 7
    %p72 = por %p70, %p71
    %p73 = scmp.ne.s32.totalorder %s65, %s68
    %p74 = scmp.eq.s32.totalorder %s8, 0
    %p75 = por %p73, %p74
    %p76 = scmp.ne.s32.totalorder %s65, %s68
    %p77 = scmp.eq.s32.totalorder %s13, 7
    %p78 = por %p76, %p77
    %p79 = scmp.ne.s32.totalorder %s68, %s69
    %p80 = scmp.eq.s32.totalorder %s13, 0
    %p81 = por %p79, %p80
    %p82 = scmp.ne.s32.totalorder %s68, %s69
    %p83 = scmp.eq.s32.totalorder %s14, 7
    %p84 = por %p82, %p83
    %p86 = scmp.ne.s32.totalorder %s69, %s85
    %p87 = scmp.eq.s32.totalorder %s14, 0
    %p88 = por %p86, %p87
    %p89 = scmp.le.s32.totalorder 1, %s8
    %p90 = scmp.lt.s32.totalorder %s8, 9
    %p91 = pnand %p89, %p90
    %p92 = pneg %p91
    // Predicated region
    $region9: #{decoder_forward.14} parent=5 // pred_check
      _
    $region10: #{decoder_forward.14} parent=5 // pred_check_branch
      %94 = sbr.rel (%p91) target = $region12
    $region11: #{decoder_forward.14} parent=5 // pred_region
      %s95 = ssub.s32 %s8, 1
      // Predicated region
      $region13: #{decoder_forward.14} parent=11 // pred_check
        %p96 = pneg %p55
      $region14: #{decoder_forward.14} parent=11 // pred_check_branch
        %98 = sbr.rel (%p96) target = $region16
      $region15: #{decoder_forward.14} parent=11 // pred_region
        _
      $region16: #{decoder_forward.14} parent=11 // pred_fallthru
        _
    $region12: #{decoder_forward.14} parent=5 // pred_fallthru
      _
    %p99 = scmp.lt.s32.totalorder %s8, 8
    // Predicated region
    $region17: #{decoder_forward.14} parent=5 // pred_check
      %p100 = pneg %p99
    $region18: #{decoder_forward.14} parent=5 // pred_check_branch
      %102 = sbr.rel (%p100) target = $region20
    $region19: #{decoder_forward.14} parent=5 // pred_region
      // Predicated region
      $region21: #{decoder_forward.14} parent=19 // pred_check
        %p103 = pneg %p28
      $region22: #{decoder_forward.14} parent=19 // pred_check_branch
        %105 = sbr.rel (%p103) target = $region24
      $region23: #{decoder_forward.14} parent=19 // pred_region
        %s106 = smul.u32 32, %s8
        %p107 = scmp.lt.s32.totalorder %s106, 255
        %s108 = scalar_select %p107, %s106, 255
        %s109 = smul.addr %s108, 4
        %s110 = scalar_lea.vmem %s0, %s109
        %s111 = smul.u32 32, %s8
      $region24: #{decoder_forward.14} parent=19 // pred_fallthru
        _
    $region20: #{decoder_forward.14} parent=5 // pred_fallthru
      _
    %p112 = scmp.le.s32.totalorder 1, %s8
    %p113 = scmp.lt.s32.totalorder %s8, 9
    %p114 = pnand %p112, %p113
    %p115 = pneg %p114
    // Predicated region
    $region25: #{decoder_forward.14} parent=5 // pred_check
      _
    $region26: #{decoder_forward.14} parent=5 // pred_check_branch
      %117 = sbr.rel (%p114) target = $region28
    $region27: #{decoder_forward.14} parent=5 // pred_region
      %s118 = ssub.s32 %s8, 1
      %s119 = smul.u32 32, %s13
      %p120 = scmp.lt.s32.totalorder %s119, 255
      %s121 = scalar_select %p120, %s119, 255
      %s122 = smul.addr %s121, 4
      %s123 = scalar_lea.vmem %s0, %s122
      %p124 = pneg %p34
      %p125 = pneg %p31
      %p126 = pneg %p55
      %p127 = pneg %p52
      %p128 = pneg %p81
      %p129 = pneg %p78
      %s130 = smul.u32 32, %s13
      %p131 = scmp.lt.s32.totalorder %s130, 255
      %s132 = scalar_select %p131, %s130, 255
      %s133 = smul.addr %s132, 8
      %s134 = scalar_lea.vmem %s2, %s133
      %s135 = smul.u32 32, %s13
      %p136 = scmp.lt.s32.totalorder %s135, 255
      %s137 = scalar_select %p136, %s135, 255
      %s138 = smul.addr %s137, 4
      %s139 = scalar_lea.vmem %s0, %s138
      %s140 = smul.u32 32, %s13
      %s141 = smul.u32 32, %s13
      %p142 = scmp.lt.s32.totalorder %s141, 255
      %s143 = scalar_select %p142, %s141, 255
      %s144 = smul.addr %s143, 8
      %s145 = scalar_lea.vmem %s2, %s144
      %s146 = smul.u32 32, %s13
      %v148 = vld [vmem:[%s139] sm:$0xf]
      %v149 = vld [vmem:[%s139 + $0x4] sm:$0xf]
      %v150 = vld [vmem:[%s139 + $0x8] sm:$0xf]
      %v151 = vld [vmem:[%s139 + $0xc] sm:$0xf]
      %v152 = vld [vmem:[%s139 + $0x10] sm:$0xf]
      %v153 = vld [vmem:[%s139 + $0x14] sm:$0xf]
      %v154 = vld [vmem:[%s139 + $0x18] sm:$0xf]
      %v155 = vld [vmem:[%s139 + $0x1c] sm:$0xf]
      %v156 = vld [vmem:[%s139 + $0x20] sm:$0xf]
      %v157 = vld [vmem:[%s139 + $0x24] sm:$0xf]
      %v158 = vld [vmem:[%s139 + $0x28] sm:$0xf]
      %v159 = vld [vmem:[%s139 + $0x2c] sm:$0xf]
      %v160 = vld [vmem:[%s139 + $0x30] sm:$0xf]
      %v161 = vld [vmem:[%s139 + $0x34] sm:$0xf]
      %v162 = vld [vmem:[%s139 + $0x38] sm:$0xf]
      %v163 = vld [vmem:[%s139 + $0x3c] sm:$0xf]
      %v164 = vld [vmem:[%s139 + $0x40] sm:$0xf]
      %v165 = vld [vmem:[%s139 + $0x44] sm:$0xf]
      %v166 = vld [vmem:[%s139 + $0x48] sm:$0xf]
      %v167 = vld [vmem:[%s139 + $0x4c] sm:$0xf]
      %v168 = vld [vmem:[%s139 + $0x50] sm:$0xf]
      %v169 = vld [vmem:[%s139 + $0x54] sm:$0xf]
      %v170 = vld [vmem:[%s139 + $0x58] sm:$0xf]
      %v171 = vld [vmem:[%s139 + $0x5c] sm:$0xf]
      %v172 = vld [vmem:[%s139 + $0x60] sm:$0xf]
      %v173 = vld [vmem:[%s139 + $0x64] sm:$0xf]
      %v174 = vld [vmem:[%s139 + $0x68] sm:$0xf]
      %v175 = vld [vmem:[%s139 + $0x6c] sm:$0xf]
      %v176 = vld [vmem:[%s139 + $0x70] sm:$0xf]
      %v177 = vld [vmem:[%s139 + $0x74] sm:$0xf]
      %v178 = vld [vmem:[%s139 + $0x78] sm:$0xf]
      %v179 = vld [vmem:[%s139 + $0x7c] sm:$0xf]
      %v180 = vld [vmem:[%s1] sm:$0x3]
      %v213 = vunpack.c.l.b16 %v148
      %v214 = vunpack.c.l.b16 %v149
      %v215 = vunpack.c.l.b16 %v150
      %v216 = vunpack.c.l.b16 %v151
      %v217 = vunpack.c.l.b16 %v152
      %v218 = vunpack.c.l.b16 %v153
      %v219 = vunpack.c.l.b16 %v154
      %v220 = vunpack.c.l.b16 %v155
      %v221 = vunpack.c.l.b16 %v156
      %v222 = vunpack.c.l.b16 %v157
      %v223 = vunpack.c.l.b16 %v158
      %v224 = vunpack.c.l.b16 %v159
      %v225 = vunpack.c.l.b16 %v160
      %v226 = vunpack.c.l.b16 %v161
      %v227 = vunpack.c.l.b16 %v162
      %v228 = vunpack.c.l.b16 %v163
      %v229 = vunpack.c.l.b16 %v164
      %v230 = vunpack.c.l.b16 %v165
      %v231 = vunpack.c.l.b16 %v166
      %v232 = vunpack.c.l.b16 %v167
      %v233 = vunpack.c.l.b16 %v168
      %v234 = vunpack.c.l.b16 %v169
      %v235 = vunpack.c.l.b16 %v170
      %v236 = vunpack.c.l.b16 %v171
      %v237 = vunpack.c.l.b16 %v172
      %v238 = vunpack.c.l.b16 %v173
      %v239 = vunpack.c.l.b16 %v174
      %v240 = vunpack.c.l.b16 %v175
      %v241 = vunpack.c.l.b16 %v176
      %v242 = vunpack.c.l.b16 %v177
      %v243 = vunpack.c.l.b16 %v178
      %v244 = vunpack.c.l.b16 %v179
      %v245 = vpack.c.b16 %v214, %v213
      %v246 = vpack.c.b16 %v216, %v215
      %v247 = vpack.c.b16 %v218, %v217
      %v248 = vpack.c.b16 %v220, %v219
      %v249 = vpack.c.b16 %v222, %v221
      %v250 = vpack.c.b16 %v224, %v223
      %v251 = vpack.c.b16 %v226, %v225
      %v252 = vpack.c.b16 %v228, %v227
      %v253 = vpack.c.b16 %v230, %v229
      %v254 = vpack.c.b16 %v232, %v231
      %v255 = vpack.c.b16 %v234, %v233
      %v256 = vpack.c.b16 %v236, %v235
      %v257 = vpack.c.b16 %v238, %v237
      %v258 = vpack.c.b16 %v240, %v239
      %v259 = vpack.c.b16 %v242, %v241
      %v260 = vpack.c.b16 %v244, %v243
      %vm261 = vcmask 31744
      %v263 = vsel %vm261, %v245, 0
      %v266 = vsel %vm261, %v246, 0
      %v269 = vsel %vm261, %v247, 0
      %v272 = vsel %vm261, %v248, 0
      %v275 = vsel %vm261, %v249, 0
      %v278 = vsel %vm261, %v250, 0
      %v281 = vsel %vm261, %v251, 0
      %v284 = vsel %vm261, %v252, 0
      %v287 = vsel %vm261, %v253, 0
      %v290 = vsel %vm261, %v254, 0
      %v293 = vsel %vm261, %v255, 0
      %v296 = vsel %vm261, %v256, 0
      %v299 = vsel %vm261, %v257, 0
      %v302 = vsel %vm261, %v258, 0
      %v305 = vsel %vm261, %v259, 0
      %v308 = vsel %vm261, %v260, 0
      %vm310 = vcmask 1041408
      %v312 = vsel %vm310, %v180, 0
      %314 = vmatprep.subr.bf16.mxu0 0
      %315 = vmatpush1.bf16.msra.mxu0 %v312
      %316 = vmatprep.subr.bf16.mxu0 0
      %317 = vmatpush1.bf16.msra.mxu0 0
      %318 = vmatprep.subr.bf16.mxu0 0
      %319 = vmatpush1.bf16.msra.mxu0 0
      %320 = vmatprep.subr.bf16.mxu0 0
      %321 = vmatpush1.bf16.msra.mxu0 0
      %322 = vmatprep.subr.bf16.mxu0 0
      %323 = vmatpush1.bf16.msra.mxu0 0
      %324 = vmatprep.subr.bf16.mxu0 0
      %325 = vmatpush1.bf16.msra.mxu0 0
      %326 = vmatprep.subr.bf16.mxu0 0
      %327 = vmatpush1.bf16.msra.mxu0 0
      %328 = vmatprep.subr.bf16.mxu0 0
      %329 = vmatpush1.bf16.msra.mxu0 0
      %330 = vmatprep.subr.bf16.mxu0 0
      %331 = vmatpush1.bf16.msra.mxu0 0
      %332 = vmatprep.subr.bf16.mxu0 0
      %333 = vmatpush1.bf16.msra.mxu0 0
      %334 = vmatprep.subr.bf16.mxu0 0
      %335 = vmatpush1.bf16.msra.mxu0 0
      %336 = vmatprep.subr.bf16.mxu0 0
      %337 = vmatpush1.bf16.msra.mxu0 0
      %338 = vmatprep.subr.bf16.mxu0 0
      %339 = vmatpush1.bf16.msra.mxu0 0
      %340 = vmatprep.subr.bf16.mxu0 0
      %341 = vmatpush1.bf16.msra.mxu0 0
      %342 = vmatprep.subr.bf16.mxu0 0
      %343 = vmatpush1.bf16.msra.mxu0 0
      %344 = vmatprep.subr.bf16.mxu0 0
      %345 = vmatpush1.bf16.msra.mxu0 0
      %346 = vmatprep.mubr.bf16.mxu0 0
      %347 = vmatmul.mubr.bf16.gmra.mrb[0].mxu0 %v263
      %v348 = vpop.f32.mrb[0].mxu0
      %v349 = vadd.f32 0.0, %v348
      %v350 = vpop.f32.mrb[0].mxu0
      %v351 = vpop.f32.mrb[0].mxu0
      %v352 = vadd.f32 0.0, %v351
      %v353 = vpop.f32.mrb[0].mxu0
      %354 = vmatprep.mubr.bf16.mxu0 0
      %355 = vmatmul.mubr.bf16.gmra.mrb[0].mxu0 %v266
      %v356 = vpop.f32.mrb[0].mxu0
      %v357 = vadd.f32 0.0, %v356
      %v358 = vpop.f32.mrb[0].mxu0
      %v359 = vpop.f32.mrb[0].mxu0
      %v360 = vadd.f32 0.0, %v359
      %v361 = vpop.f32.mrb[0].mxu0
      %362 = vmatprep.mubr.bf16.mxu0 0
      %363 = vmatmul.mubr.bf16.gmra.mrb[0].mxu0 %v269
      %v364 = vpop.f32.mrb[0].mxu0
      %v365 = vadd.f32 0.0, %v364
      %v366 = vpop.f32.mrb[0].mxu0
      %v367 = vpop.f32.mrb[0].mxu0
      %v368 = vadd.f32 0.0, %v367
      %v369 = vpop.f32.mrb[0].mxu0
      %370 = vmatprep.mubr.bf16.mxu0 0
      %371 = vmatmul.mubr.bf16.gmra.mrb[0].mxu0 %v272
      %v372 = vpop.f32.mrb[0].mxu0
      %v373 = vadd.f32 0.0, %v372
      %v374 = vpop.f32.mrb[0].mxu0
      %v375 = vpop.f32.mrb[0].mxu0
      %v376 = vadd.f32 0.0, %v375
      %v377 = vpop.f32.mrb[0].mxu0
      %378 = vmatprep.mubr.bf16.mxu0 0
      %379 = vmatmul.mubr.bf16.gmra.mrb[0].mxu0 %v275
      %v380 = vpop.f32.mrb[0].mxu0
      %v381 = vadd.f32 0.0, %v380
      %v382 = vpop.f32.mrb[0].mxu0
      %v383 = vpop.f32.mrb[0].mxu0
      %v384 = vadd.f32 0.0, %v383
      %v385 = vpop.f32.mrb[0].mxu0
      %386 = vmatprep.mubr.bf16.mxu0 0
      %387 = vmatmul.mubr.bf16.gmra.mrb[0].mxu0 %v278
      %v388 = vpop.f32.mrb[0].mxu0
      %v389 = vadd.f32 0.0, %v388
      %v390 = vpop.f32.mrb[0].mxu0
      %v391 = vpop.f32.mrb[0].mxu0
      %v392 = vadd.f32 0.0, %v391
      %v393 = vpop.f32.mrb[0].mxu0
      %394 = vmatprep.mubr.bf16.mxu0 0
      %395 = vmatmul.mubr.bf16.gmra.mrb[0].mxu0 %v281
      %v396 = vpop.f32.mrb[0].mxu0
      %v397 = vadd.f32 0.0, %v396
      %v398 = vpop.f32.mrb[0].mxu0
      %v399 = vpop.f32.mrb[0].mxu0
      %v400 = vadd.f32 0.0, %v399
      %v401 = vpop.f32.mrb[0].mxu0
      %402 = vmatprep.mubr.bf16.mxu0 0
      %403 = vmatmul.mubr.bf16.gmra.mrb[0].mxu0 %v284
      %v404 = vpop.f32.mrb[0].mxu0
      %v405 = vadd.f32 0.0, %v404
      %v406 = vpop.f32.mrb[0].mxu0
      %v407 = vpop.f32.mrb[0].mxu0
      %v408 = vadd.f32 0.0, %v407
      %v409 = vpop.f32.mrb[0].mxu0
      %410 = vmatprep.mubr.bf16.mxu0 0
      %411 = vmatmul.mubr.bf16.gmra.mrb[0].mxu0 %v287
      %v412 = vpop.f32.mrb[0].mxu0
      %v413 = vadd.f32 0.0, %v412
      %v414 = vpop.f32.mrb[0].mxu0
      %v415 = vpop.f32.mrb[0].mxu0
      %v416 = vadd.f32 0.0, %v415
      %v417 = vpop.f32.mrb[0].mxu0
      %418 = vmatprep.mubr.bf16.mxu0 0
      %419 = vmatmul.mubr.bf16.gmra.mrb[0].mxu0 %v290
      %v420 = vpop.f32.mrb[0].mxu0
      %v421 = vadd.f32 0.0, %v420
      %v422 = vpop.f32.mrb[0].mxu0
      %v423 = vpop.f32.mrb[0].mxu0
      %v424 = vadd.f32 0.0, %v423
      %v425 = vpop.f32.mrb[0].mxu0
      %426 = vmatprep.mubr.bf16.mxu0 0
      %427 = vmatmul.mubr.bf16.gmra.mrb[0].mxu0 %v293
      %v428 = vpop.f32.mrb[0].mxu0
      %v429 = vadd.f32 0.0, %v428
      %v430 = vpop.f32.mrb[0].mxu0
      %v431 = vpop.f32.mrb[0].mxu0
      %v432 = vadd.f32 0.0, %v431
      %v433 = vpop.f32.mrb[0].mxu0
      %434 = vmatprep.mubr.bf16.mxu0 0
      %435 = vmatmul.mubr.bf16.gmra.mrb[0].mxu0 %v296
      %v436 = vpop.f32.mrb[0].mxu0
      %v437 = vadd.f32 0.0, %v436
      %v438 = vpop.f32.mrb[0].mxu0
      %v439 = vpop.f32.mrb[0].mxu0
      %v440 = vadd.f32 0.0, %v439
      %v441 = vpop.f32.mrb[0].mxu0
      %442 = vmatprep.mubr.bf16.mxu0 0
      %443 = vmatmul.mubr.bf16.gmra.mrb[0].mxu0 %v299
      %v444 = vpop.f32.mrb[0].mxu0
      %v445 = vadd.f32 0.0, %v444
      %v446 = vpop.f32.mrb[0].mxu0
      %v447 = vpop.f32.mrb[0].mxu0
      %v448 = vadd.f32 0.0, %v447
      %v449 = vpop.f32.mrb[0].mxu0
      %450 = vmatprep.mubr.bf16.mxu0 0
      %451 = vmatmul.mubr.bf16.gmra.mrb[0].mxu0 %v302
      %v452 = vpop.f32.mrb[0].mxu0
      %v453 = vadd.f32 0.0, %v452
      %v454 = vpop.f32.mrb[0].mxu0
      %v455 = vpop.f32.mrb[0].mxu0
      %v456 = vadd.f32 0.0, %v455
      %v457 = vpop.f32.mrb[0].mxu0
      %458 = vmatprep.mubr.bf16.mxu0 0
      %459 = vmatmul.mubr.bf16.gmra.mrb[0].mxu0 %v305
      %v460 = vpop.f32.mrb[0].mxu0
      %v461 = vadd.f32 0.0, %v460
      %v462 = vpop.f32.mrb[0].mxu0
      %v463 = vpop.f32.mrb[0].mxu0
      %v464 = vadd.f32 0.0, %v463
      %v465 = vpop.f32.mrb[0].mxu0
      %466 = vmatprep.mubr.bf16.mxu0 0
      %467 = vmatmul.mubr.bf16.gmra.mrb[0].mxu0 %v308
      %v468 = vpop.f32.mrb[0].mxu0
      %v469 = vadd.f32 0.0, %v468
      %v470 = vpop.f32.mrb[0].mxu0
      %v471 = vpop.f32.mrb[0].mxu0
      %v472 = vadd.f32 0.0, %v471
      %v473 = vpop.f32.mrb[0].mxu0
      %474 = vdwg.mxu0
      %vm475 = vcmask 392192
      %476 = vst.msk [vmem:[%s145] sm:$0xff] %vm475, %v349
      %477 = vst.msk [vmem:[%s145 + $0x8] sm:$0xff] %vm475, %v352
      %478 = vst.msk [vmem:[%s145 + $0x10] sm:$0xff] %vm475, %v357
      %479 = vst.msk [vmem:[%s145 + $0x18] sm:$0xff] %vm475, %v360
      %480 = vst.msk [vmem:[%s145 + $0x20] sm:$0xff] %vm475, %v365
      %481 = vst.msk [vmem:[%s145 + $0x28] sm:$0xff] %vm475, %v368
      %482 = vst.msk [vmem:[%s145 + $0x30] sm:$0xff] %vm475, %v373
      %483 = vst.msk [vmem:[%s145 + $0x38] sm:$0xff] %vm475, %v376
      %484 = vst.msk [vmem:[%s145 + $0x40] sm:$0xff] %vm475, %v381
      %485 = vst.msk [vmem:[%s145 + $0x48] sm:$0xff] %vm475, %v384
      %486 = vst.msk [vmem:[%s145 + $0x50] sm:$0xff] %vm475, %v389
      %487 = vst.msk [vmem:[%s145 + $0x58] sm:$0xff] %vm475, %v392
      %488 = vst.msk [vmem:[%s145 + $0x60] sm:$0xff] %vm475, %v397
      %489 = vst.msk [vmem:[%s145 + $0x68] sm:$0xff] %vm475, %v400
      %490 = vst.msk [vmem:[%s145 + $0x70] sm:$0xff] %vm475, %v405
      %491 = vst.msk [vmem:[%s145 + $0x78] sm:$0xff] %vm475, %v408
      %492 = vst.msk [vmem:[%s145 + $0x80] sm:$0xff] %vm475, %v413
      %493 = vst.msk [vmem:[%s145 + $0x88] sm:$0xff] %vm475, %v416
      %494 = vst.msk [vmem:[%s145 + $0x90] sm:$0xff] %vm475, %v421
      %495 = vst.msk [vmem:[%s145 + $0x98] sm:$0xff] %vm475, %v424
      %496 = vst.msk [vmem:[%s145 + $0xa0] sm:$0xff] %vm475, %v429
      %497 = vst.msk [vmem:[%s145 + $0xa8] sm:$0xff] %vm475, %v432
      %498 = vst.msk [vmem:[%s145 + $0xb0] sm:$0xff] %vm475, %v437
      %499 = vst.msk [vmem:[%s145 + $0xb8] sm:$0xff] %vm475, %v440
      %500 = vst.msk [vmem:[%s145 + $0xc0] sm:$0xff] %vm475, %v445
      %501 = vst.msk [vmem:[%s145 + $0xc8] sm:$0xff] %vm475, %v448
      %502 = vst.msk [vmem:[%s145 + $0xd0] sm:$0xff] %vm475, %v453
      %503 = vst.msk [vmem:[%s145 + $0xd8] sm:$0xff] %vm475, %v456
      %504 = vst.msk [vmem:[%s145 + $0xe0] sm:$0xff] %vm475, %v461
      %505 = vst.msk [vmem:[%s145 + $0xe8] sm:$0xff] %vm475, %v464
      %506 = vst.msk [vmem:[%s145 + $0xf0] sm:$0xff] %vm475, %v469
      %507 = vst.msk [vmem:[%s145 + $0xf8] sm:$0xff] %vm475, %v472
      %s508 = smul.u32 32, %s13
      %p509 = scmp.lt.s32.totalorder %s508, 255
      %s510 = scalar_select %p509, %s508, 255
      %s511 = smul.addr %s510, 8
      %s512 = scalar_lea.vmem %s2, %s511
      // Predicated region
      $region29: #{decoder_forward.14} parent=27 // pred_check
        %p513 = pneg %p78
      $region30: #{decoder_forward.14} parent=27 // pred_check_branch
        %515 = sbr.rel (%p513) target = $region32
      $region31: #{decoder_forward.14} parent=27 // pred_region
        %s516 = smul.u32 32, %s13
      $region32: #{decoder_forward.14} parent=27 // pred_fallthru
        _
    $region28: #{decoder_forward.14} parent=5 // pred_fallthru
      _
    %p517 = scmp.le.s32.totalorder 2, %s8
    // Predicated region
    $region33: #{decoder_forward.14} parent=5 // pred_check
      %p518 = pneg %p517
    $region34: #{decoder_forward.14} parent=5 // pred_check_branch
      %520 = sbr.rel (%p518) target = $region36
    $region35: #{decoder_forward.14} parent=5 // pred_region
      %s521 = ssub.s32 %s8, 2
      // Predicated region
      $region37: #{decoder_forward.14} parent=35 // pred_check
        %p522 = pneg %p84
      $region38: #{decoder_forward.14} parent=35 // pred_check_branch
        %524 = sbr.rel (%p522) target = $region40
      $region39: #{decoder_forward.14} parent=35 // pred_region
        %s525 = smul.u32 32, %s14
        %p526 = scmp.lt.s32.totalorder %s525, 255
        %s527 = scalar_select %p526, %s525, 255
        %s528 = smul.addr %s527, 8
        %s529 = scalar_lea.vmem %s2, %s528
      $region40: #{decoder_forward.14} parent=35 // pred_fallthru
        _
    $region36: #{decoder_forward.14} parent=5 // pred_fallthru
      _
  $region6: #{decoder_forward.14} parent=0 // loop_footer
    %s12 = sadd.s32 1, %s8
  $region7: #{decoder_forward.14} parent=0 // loop_footer_branch
    %7 = sbr.rel target = $region3
  $region8: #{decoder_forward.14} parent=0 // loop_exit
    _

// kernel: tile.38
$region0: #{tile.38}
  #allocation0 [shape = 's32[1]{0}', space=sflag, size = 0x4, scoped, tag = 'scoped memory for tile.38']
  %s0 = inlined_call_operand.vmem [shape: f32[3], index: 0, kind: input, shape index: {}]
  %s1 = inlined_call_operand.vmem [shape: f32[64,3], index: 1, kind: output, shape index: {}]
  // Predicated region
  $region2: #{tile.38} parent=0 // pred_check
    _
  $region3: #{tile.38} parent=0 // pred_check_branch
    %3 = sbr.rel (0) target = $region5
  $region4: #{tile.38} parent=0 // pred_region
    _
  $region5: #{tile.38} parent=0 // pred_fallthru
    _
  %v4 = vld [vmem:[%s0] ss:$0 sm:$0xff]
  %5 = vst [vmem:[%s1] sm:$0xff] %v4
  %s6 = scalar_lea.vmem %s1, 8
  %7 = vst [vmem:[%s6] sm:$0xff] %v4
  %s8 = scalar_lea.vmem %s1, 16
  %9 = vst [vmem:[%s8] sm:$0xff] %v4
  %s10 = scalar_lea.vmem %s1, 24
  %11 = vst [vmem:[%s10] sm:$0xff] %v4
  %s12 = scalar_lea.vmem %s1, 32
  %13 = vst [vmem:[%s12] sm:$0xff] %v4
  %s14 = scalar_lea.vmem %s1, 40
  %15 = vst [vmem:[%s14] sm:$0xff] %v4
  %s16 = scalar_lea.vmem %s1, 48
  %17 = vst [vmem:[%s16] sm:$0xff] %v4
  %s18 = scalar_lea.vmem %s1, 56
  %19 = vst [vmem:[%s18] sm:$0xff] %v4

// kernel: tile.39
$region0: #{tile.39}
  %s0 = inlined_call_operand.vmem [shape: f32[64,3], index: 0, kind: input, shape index: {}]
  %s1 = inlined_call_operand.vmem [shape: f32[1,192], index: 1, kind: output, shape index: {}]
  $region1: #{tile.39} parent=0
    #allocation0 [shape = 'u8[8192]{0}', space=vmem, size = 0x2000, scoped, tag = 'scoped mem for output reshape']
    %v2 = vld [vmem:[%s0] sm:$0x1]
    %vm3 = vcmask 23552
    %4 = vst.msk [vmem:[#allocation0] sm:$0x1] %vm3, %v2
    %s5 = scalar_lea.vmem %s0, 42
    %v6 = vld [vmem:[%s5] sm:$0x1]
    %s7 = scalar_lea.vmem %s0, 42
    %v8 = vld [vmem:[%s7] sm:$0x1]
    %vm9 = vcmask 15360
    %v10 = vsel %vm9, %v8, %v6
    %11 = vrot.lane.b32.xlu0 %v10, 126
    %v12 = vpop.permute.xlu0 %11
    %vm13 = vcmask 7168
    %s14 = scalar_lea.vmem [#allocation0], 8
    %15 = vst.msk [vmem:[%s14] sm:$0x1] %vm13, %v12
    %vm16 = vcmask 1048560
    %17 = vst.msk [vmem:[#allocation0] sm:$0x1] %vm16, %v12
    %s18 = scalar_lea.vmem %s0, 41
    %v19 = vld [vmem:[%s18] sm:$0x1]
    %20 = vrot.lane.b32.xlu0 %v19, 123
    %v21 = vpop.permute.xlu0 %20
    %vm22 = vcmask 1032152
    %23 = vst.msk [vmem:[#allocation0] sm:$0x1] %vm22, %v21
    %s24 = scalar_lea.vmem %s0, 40
    %v25 = vld [vmem:[%s24] sm:$0x1]
    %26 = vrot.lane.b32.xlu0 %v25, 120
    %v27 = vpop.permute.xlu0 %26
    %vm28 = vcmask 1007552
    %29 = vst.msk [vmem:[#allocation0] sm:$0x1] %vm28, %v27
    %s30 = scalar_lea.vmem %s0, 39
    %v31 = vld [vmem:[%s30] sm:$0x1]
    %32 = vrot.lane.b32.xlu0 %v31, 117
    %v33 = vpop.permute.xlu0 %32
    %vm34 = vcmask 982952
    %35 = vst.msk [vmem:[#allocation0] sm:$0x1] %vm34, %v33
    %s36 = scalar_lea.vmem %s0, 38
    %v37 = vld [vmem:[%s36] sm:$0x1]
    %38 = vrot.lane.b32.xlu0 %v37, 114
    %v39 = vpop.permute.xlu0 %38
    %vm40 = vcmask 958352
    %41 = vst.msk [vmem:[#allocation0] sm:$0x1] %vm40, %v39
    %s42 = scalar_lea.vmem %s0, 37
    %v43 = vld [vmem:[%s42] sm:$0x1]
    %44 = vrot.lane.b32.xlu0 %v43, 111
    %v45 = vpop.permute.xlu0 %44
    %vm46 = vcmask 933752
    %47 = vst.msk [vmem:[#allocation0] sm:$0x1] %vm46, %v45
    %s48 = scalar_lea.vmem %s0, 36
    %v49 = vld [vmem:[%s48] sm:$0x1]
    %50 = vrot.lane.b32.xlu0 %v49, 108
    %v51 = vpop.permute.xlu0 %50
    %vm52 = vcmask 909152
    %53 = vst.msk [vmem:[#allocation0] sm:$0x1] %vm52, %v51
    %s54 = scalar_lea.vmem %s0, 35
    %v55 = vld [vmem:[%s54] sm:$0x1]
    %56 = vrot.lane.b32.xlu0 %v55, 105
    %v57 = vpop.permute.xlu0 %56
    %vm58 = vcmask 884552
    %59 = vst.msk [vmem:[#allocation0] sm:$0x1] %vm58, %v57
    %s60 = scalar_lea.vmem %s0, 34
    %v61 = vld [vmem:[%s60] sm:$0x1]
    %62 = vrot.lane.b32.xlu0 %v61, 102
    %v63 = vpop.permute.xlu0 %62
    %vm64 = vcmask 859952
    %65 = vst.msk [vmem:[#allocation0] sm:$0x1] %vm64, %v63
    %s66 = scalar_lea.vmem %s0, 33
    %v67 = vld [vmem:[%s66] sm:$0x1]
    %68 = vrot.lane.b32.xlu0 %v67, 99
    %v69 = vpop.permute.xlu0 %68
    %vm70 = vcmask 835352
    %71 = vst.msk [vmem:[#allocation0] sm:$0x1] %vm70, %v69
    %s72 = scalar_lea.vmem %s0, 32
    %v73 = vld [vmem:[%s72] sm:$0x1]
    %74 = vrot.lane.b32.xlu0 %v73, 96
    %v75 = vpop.permute.xlu0 %74
    %vm76 = vcmask 810752
    %77 = vst.msk [vmem:[#allocation0] sm:$0x1] %vm76, %v75
    %s78 = scalar_lea.vmem %s0, 31
    %v79 = vld [vmem:[%s78] sm:$0x1]
    %80 = vrot.lane.b32.xlu0 %v79, 93
    %v81 = vpop.permute.xlu0 %80
    %vm82 = vcmask 786152
    %83 = vst.msk [vmem:[#allocation0] sm:$0x1] %vm82, %v81
    %s84 = scalar_lea.vmem %s0, 30
    %v85 = vld [vmem:[%s84] sm:$0x1]
    %86 = vrot.lane.b32.xlu0 %v85, 90
    %v87 = vpop.permute.xlu0 %86
    %vm88 = vcmask 761552
    %89 = vst.msk [vmem:[#allocation0] sm:$0x1] %vm88, %v87
    %s90 = scalar_lea.vmem %s0, 29
    %v91 = vld [vmem:[%s90] sm:$0x1]
    %92 = vrot.lane.b32.xlu0 %v91, 87
    %v93 = vpop.permute.xlu0 %92
    %vm94 = vcmask 736952
    %95 = vst.msk [vmem:[#allocation0] sm:$0x1] %vm94, %v93
    %s96 = scalar_lea.vmem %s0, 28
    %v97 = vld [vmem:[%s96] sm:$0x1]
    %98 = vrot.lane.b32.xlu0 %v97, 84
    %v99 = vpop.permute.xlu0 %98
    %vm100 = vcmask 712352
    %101 = vst.msk [vmem:[#allocation0] sm:$0x1] %vm100, %v99
    %s102 = scalar_lea.vmem %s0, 27
    %v103 = vld [vmem:[%s102] sm:$0x1]
    %104 = vrot.lane.b32.xlu0 %v103, 81
    %v105 = vpop.permute.xlu0 %104
    %vm106 = vcmask 687752
    %107 = vst.msk [vmem:[#allocation0] sm:$0x1] %vm106, %v105
    %s108 = scalar_lea.vmem %s0, 26
    %v109 = vld [vmem:[%s108] sm:$0x1]
    %110 = vrot.lane.b32.xlu0 %v109, 78
    %v111 = vpop.permute.xlu0 %110
    %vm112 = vcmask 663152
    %113 = vst.msk [vmem:[#allocation0] sm:$0x1] %vm112, %v111
    %s114 = scalar_lea.vmem %s0, 25
    %v115 = vld [vmem:[%s114] sm:$0x1]
    %116 = vrot.lane.b32.xlu0 %v115, 75
    %v117 = vpop.permute.xlu0 %116
    %vm118 = vcmask 638552
    %119 = vst.msk [vmem:[#allocation0] sm:$0x1] %vm118, %v117
    %s120 = scalar_lea.vmem %s0, 24
    %v121 = vld [vmem:[%s120] sm:$0x1]
    %122 = vrot.lane.b32.xlu0 %v121, 72
    %v123 = vpop.permute.xlu0 %122
    %vm124 = vcmask 613952
    %125 = vst.msk [vmem:[#allocation0] sm:$0x1] %vm124, %v123
    %s126 = scalar_lea.vmem %s0, 23
    %v127 = vld [vmem:[%s126] sm:$0x1]
    %128 = vrot.lane.b32.xlu0 %v127, 69
    %v129 = vpop.permute.xlu0 %128
    %vm130 = vcmask 589352
    %131 = vst.msk [vmem:[#allocation0] sm:$0x1] %vm130, %v129
    %s132 = scalar_lea.vmem %s0, 22
    %v133 = vld [vmem:[%s132] sm:$0x1]
    %134 = vrot.lane.b32.xlu0 %v133, 66
    %v135 = vpop.permute.xlu0 %134
    %vm136 = vcmask 564752
    %137 = vst.msk [vmem:[#allocation0] sm:$0x1] %vm136, %v135
    %s138 = scalar_lea.vmem %s0, 21
    %v139 = vld [vmem:[%s138] sm:$0x1]
    %140 = vrot.lane.b32.xlu0 %v139, 63
    %v141 = vpop.permute.xlu0 %140
    %vm142 = vcmask 540152
    %143 = vst.msk [vmem:[#allocation0] sm:$0x1] %vm142, %v141
    %s144 = scalar_lea.vmem %s0, 63
    %v145 = vld [vmem:[%s144] sm:$0x1]
    %146 = vrot.lane.b32.xlu0 %v145, 61
    %v147 = vpop.permute.xlu0 %146
    %vm148 = vcmask 523752
    %s149 = scalar_lea.vmem [#allocation0], 8
    %150 = vst.msk [vmem:[%s149] sm:$0x1] %vm148, %v147
    %s151 = scalar_lea.vmem %s0, 20
    %v152 = vld [vmem:[%s151] sm:$0x1]
    %153 = vrot.lane.b32.xlu0 %v152, 60
    %v154 = vpop.permute.xlu0 %153
    %vm155 = vcmask 515552
    %156 = vst.msk [vmem:[#allocation0] sm:$0x1] %vm155, %v154
    %s157 = scalar_lea.vmem %s0, 62
    %v158 = vld [vmem:[%s157] sm:$0x1]
    %159 = vrot.lane.b32.xlu0 %v158, 58
    %v160 = vpop.permute.xlu0 %159
    %vm161 = vcmask 499152
    %s162 = scalar_lea.vmem [#allocation0], 8
    %163 = vst.msk [vmem:[%s162] sm:$0x1] %vm161, %v160
    %s164 = scalar_lea.vmem %s0, 19
    %v165 = vld [vmem:[%s164] sm:$0x1]
    %166 = vrot.lane.b32.xlu0 %v165, 57
    %v167 = vpop.permute.xlu0 %166
    %vm168 = vcmask 490952
    %169 = vst.msk [vmem:[#allocation0] sm:$0x1] %vm168, %v167
    %s170 = scalar_lea.vmem %s0, 61
    %v171 = vld [vmem:[%s170] sm:$0x1]
    %172 = vrot.lane.b32.xlu0 %v171, 55
    %v173 = vpop.permute.xlu0 %172
    %vm174 = vcmask 474552
    %s175 = scalar_lea.vmem [#allocation0], 8
    %176 = vst.msk [vmem:[%s175] sm:$0x1] %vm174, %v173
    %s177 = scalar_lea.vmem %s0, 18
    %v178 = vld [vmem:[%s177] sm:$0x1]
    %179 = vrot.lane.b32.xlu0 %v178, 54
    %v180 = vpop.permute.xlu0 %179
    %vm181 = vcmask 466352
    %182 = vst.msk [vmem:[#allocation0] sm:$0x1] %vm181, %v180
    %s183 = scalar_lea.vmem %s0, 60
    %v184 = vld [vmem:[%s183] sm:$0x1]
    %185 = vrot.lane.b32.xlu0 %v184, 52
    %v186 = vpop.permute.xlu0 %185
    %vm187 = vcmask 449952
    %s188 = scalar_lea.vmem [#allocation0], 8
    %189 = vst.msk [vmem:[%s188] sm:$0x1] %vm187, %v186
    %s190 = scalar_lea.vmem %s0, 17
    %v191 = vld [vmem:[%s190] sm:$0x1]
    %192 = vrot.lane.b32.xlu0 %v191, 51
    %v193 = vpop.permute.xlu0 %192
    %vm194 = vcmask 441752
    %195 = vst.msk [vmem:[#allocation0] sm:$0x1] %vm194, %v193
    %s196 = scalar_lea.vmem %s0, 59
    %v197 = vld [vmem:[%s196] sm:$0x1]
    %198 = vrot.lane.b32.xlu0 %v197, 49
    %v199 = vpop.permute.xlu0 %198
    %vm200 = vcmask 425352
    %s201 = scalar_lea.vmem [#allocation0], 8
    %202 = vst.msk [vmem:[%s201] sm:$0x1] %vm200, %v199
    %s203 = scalar_lea.vmem %s0, 16
    %v204 = vld [vmem:[%s203] sm:$0x1]
    %205 = vrot.lane.b32.xlu0 %v204, 48
    %v206 = vpop.permute.xlu0 %205
    %vm207 = vcmask 417152
    %208 = vst.msk [vmem:[#allocation0] sm:$0x1] %vm207, %v206
    %s209 = scalar_lea.vmem %s0, 58
    %v210 = vld [vmem:[%s209] sm:$0x1]
    %211 = vrot.lane.b32.xlu0 %v210, 46
    %v212 = vpop.permute.xlu0 %211
    %vm213 = vcmask 400752
    %s214 = scalar_lea.vmem [#allocation0], 8
    %215 = vst.msk [vmem:[%s214] sm:$0x1] %vm213, %v212
    %s216 = scalar_lea.vmem %s0, 15
    %v217 = vld [vmem:[%s216] sm:$0x1]
    %218 = vrot.lane.b32.xlu0 %v217, 45
    %v219 = vpop.permute.xlu0 %218
    %vm220 = vcmask 392552
    %221 = vst.msk [vmem:[#allocation0] sm:$0x1] %vm220, %v219
    %s222 = scalar_lea.vmem %s0, 57
    %v223 = vld [vmem:[%s222] sm:$0x1]
    %224 = vrot.lane.b32.xlu0 %v223, 43
    %v225 = vpop.permute.xlu0 %224
    %vm226 = vcmask 376152
    %s227 = scalar_lea.vmem [#allocation0], 8
    %228 = vst.msk [vmem:[%s227] sm:$0x1] %vm226, %v225
    %s229 = scalar_lea.vmem %s0, 14
    %v230 = vld [vmem:[%s229] sm:$0x1]
    %231 = vrot.lane.b32.xlu0 %v230, 42
    %v232 = vpop.permute.xlu0 %231
    %vm233 = vcmask 367952
    %234 = vst.msk [vmem:[#allocation0] sm:$0x1] %vm233, %v232
    %s235 = scalar_lea.vmem %s0, 56
    %v236 = vld [vmem:[%s235] sm:$0x1]
    %237 = vrot.lane.b32.xlu0 %v236, 40
    %v238 = vpop.permute.xlu0 %237
    %vm239 = vcmask 351552
    %s240 = scalar_lea.vmem [#allocation0], 8
    %241 = vst.msk [vmem:[%s240] sm:$0x1] %vm239, %v238
    %s242 = scalar_lea.vmem %s0, 13
    %v243 = vld [vmem:[%s242] sm:$0x1]
    %244 = vrot.lane.b32.xlu0 %v243, 39
    %v245 = vpop.permute.xlu0 %244
    %vm246 = vcmask 343352
    %247 = vst.msk [vmem:[#allocation0] sm:$0x1] %vm246, %v245
    %s248 = scalar_lea.vmem %s0, 55
    %v249 = vld [vmem:[%s248] sm:$0x1]
    %250 = vrot.lane.b32.xlu0 %v249, 37
    %v251 = vpop.permute.xlu0 %250
    %vm252 = vcmask 326952
    %s253 = scalar_lea.vmem [#allocation0], 8
    %254 = vst.msk [vmem:[%s253] sm:$0x1] %vm252, %v251
    %s255 = scalar_lea.vmem %s0, 12
    %v256 = vld [vmem:[%s255] sm:$0x1]
    %257 = vrot.lane.b32.xlu0 %v256, 36
    %v258 = vpop.permute.xlu0 %257
    %vm259 = vcmask 318752
    %260 = vst.msk [vmem:[#allocation0] sm:$0x1] %vm259, %v258
    %s261 = scalar_lea.vmem %s0, 54
    %v262 = vld [vmem:[%s261] sm:$0x1]
    %263 = vrot.lane.b32.xlu0 %v262, 34
    %v264 = vpop.permute.xlu0 %263
    %vm265 = vcmask 302352
    %s266 = scalar_lea.vmem [#allocation0], 8
    %267 = vst.msk [vmem:[%s266] sm:$0x1] %vm265, %v264
    %s268 = scalar_lea.vmem %s0, 11
    %v269 = vld [vmem:[%s268] sm:$0x1]
    %270 = vrot.lane.b32.xlu0 %v269, 33
    %v271 = vpop.permute.xlu0 %270
    %vm272 = vcmask 294152
    %273 = vst.msk [vmem:[#allocation0] sm:$0x1] %vm272, %v271
    %s274 = scalar_lea.vmem %s0, 53
    %v275 = vld [vmem:[%s274] sm:$0x1]
    %276 = vrot.lane.b32.xlu0 %v275, 31
    %v277 = vpop.permute.xlu0 %276
    %vm278 = vcmask 277752
    %s279 = scalar_lea.vmem [#allocation0], 8
    %280 = vst.msk [vmem:[%s279] sm:$0x1] %vm278, %v277
    %s281 = scalar_lea.vmem %s0, 10
    %v282 = vld [vmem:[%s281] sm:$0x1]
    %283 = vrot.lane.b32.xlu0 %v282, 30
    %v284 = vpop.permute.xlu0 %283
    %vm285 = vcmask 269552
    %286 = vst.msk [vmem:[#allocation0] sm:$0x1] %vm285, %v284
    %s287 = scalar_lea.vmem %s0, 52
    %v288 = vld [vmem:[%s287] sm:$0x1]
    %289 = vrot.lane.b32.xlu0 %v288, 28
    %v290 = vpop.permute.xlu0 %289
    %vm291 = vcmask 253152
    %s292 = scalar_lea.vmem [#allocation0], 8
    %293 = vst.msk [vmem:[%s292] sm:$0x1] %vm291, %v290
    %s294 = scalar_lea.vmem %s0, 9
    %v295 = vld [vmem:[%s294] sm:$0x1]
    %296 = vrot.lane.b32.xlu0 %v295, 27
    %v297 = vpop.permute.xlu0 %296
    %vm298 = vcmask 244952
    %299 = vst.msk [vmem:[#allocation0] sm:$0x1] %vm298, %v297
    %s300 = scalar_lea.vmem %s0, 51
    %v301 = vld [vmem:[%s300] sm:$0x1]
    %302 = vrot.lane.b32.xlu0 %v301, 25
    %v303 = vpop.permute.xlu0 %302
    %vm304 = vcmask 228552
    %s305 = scalar_lea.vmem [#allocation0], 8
    %306 = vst.msk [vmem:[%s305] sm:$0x1] %vm304, %v303
    %s307 = scalar_lea.vmem %s0, 8
    %v308 = vld [vmem:[%s307] sm:$0x1]
    %309 = vrot.lane.b32.xlu0 %v308, 24
    %v310 = vpop.permute.xlu0 %309
    %vm311 = vcmask 220352
    %312 = vst.msk [vmem:[#allocation0] sm:$0x1] %vm311, %v310
    %s313 = scalar_lea.vmem %s0, 50
    %v314 = vld [vmem:[%s313] sm:$0x1]
    %315 = vrot.lane.b32.xlu0 %v314, 22
    %v316 = vpop.permute.xlu0 %315
    %vm317 = vcmask 203952
    %s318 = scalar_lea.vmem [#allocation0], 8
    %319 = vst.msk [vmem:[%s318] sm:$0x1] %vm317, %v316
    %s320 = scalar_lea.vmem %s0, 7
    %v321 = vld [vmem:[%s320] sm:$0x1]
    %322 = vrot.lane.b32.xlu0 %v321, 21
    %v323 = vpop.permute.xlu0 %322
    %vm324 = vcmask 195752
    %325 = vst.msk [vmem:[#allocation0] sm:$0x1] %vm324, %v323
    %s326 = scalar_lea.vmem %s0, 49
    %v327 = vld [vmem:[%s326] sm:$0x1]
    %328 = vrot.lane.b32.xlu0 %v327, 19
    %v329 = vpop.permute.xlu0 %328
    %vm330 = vcmask 179352
    %s331 = scalar_lea.vmem [#allocation0], 8
    %332 = vst.msk [vmem:[%s331] sm:$0x1] %vm330, %v329
    %s333 = scalar_lea.vmem %s0, 6
    %v334 = vld [vmem:[%s333] sm:$0x1]
    %335 = vrot.lane.b32.xlu0 %v334, 18
    %v336 = vpop.permute.xlu0 %335
    %vm337 = vcmask 171152
    %338 = vst.msk [vmem:[#allocation0] sm:$0x1] %vm337, %v336
    %s339 = scalar_lea.vmem %s0, 48
    %v340 = vld [vmem:[%s339] sm:$0x1]
    %341 = vrot.lane.b32.xlu0 %v340, 16
    %v342 = vpop.permute.xlu0 %341
    %vm343 = vcmask 154752
    %s344 = scalar_lea.vmem [#allocation0], 8
    %345 = vst.msk [vmem:[%s344] sm:$0x1] %vm343, %v342
    %s346 = scalar_lea.vmem %s0, 5
    %v347 = vld [vmem:[%s346] sm:$0x1]
    %348 = vrot.lane.b32.xlu0 %v347, 15
    %v349 = vpop.permute.xlu0 %348
    %vm350 = vcmask 146552
    %351 = vst.msk [vmem:[#allocation0] sm:$0x1] %vm350, %v349
    %s352 = scalar_lea.vmem %s0, 47
    %v353 = vld [vmem:[%s352] sm:$0x1]
    %354 = vrot.lane.b32.xlu0 %v353, 13
    %v355 = vpop.permute.xlu0 %354
    %vm356 = vcmask 130152
    %s357 = scalar_lea.vmem [#allocation0], 8
    %358 = vst.msk [vmem:[%s357] sm:$0x1] %vm356, %v355
    %s359 = scalar_lea.vmem %s0, 4
    %v360 = vld [vmem:[%s359] sm:$0x1]
    %361 = vrot.lane.b32.xlu0 %v360, 12
    %v362 = vpop.permute.xlu0 %361
    %vm363 = vcmask 121952
    %364 = vst.msk [vmem:[#allocation0] sm:$0x1] %vm363, %v362
    %s365 = scalar_lea.vmem %s0, 46
    %v366 = vld [vmem:[%s365] sm:$0x1]
    %367 = vrot.lane.b32.xlu0 %v366, 10
    %v368 = vpop.permute.xlu0 %367
    %vm369 = vcmask 105552
    %s370 = scalar_lea.vmem [#allocation0], 8
    %371 = vst.msk [vmem:[%s370] sm:$0x1] %vm369, %v368
    %s372 = scalar_lea.vmem %s0, 3
    %v373 = vld [vmem:[%s372] sm:$0x1]
    %374 = vrot.lane.b32.xlu0 %v373, 9
    %v375 = vpop.permute.xlu0 %374
    %vm376 = vcmask 97352
    %377 = vst.msk [vmem:[#allocation0] sm:$0x1] %vm376, %v375
    %s378 = scalar_lea.vmem %s0, 45
    %v379 = vld [vmem:[%s378] sm:$0x1]
    %380 = vrot.lane.b32.xlu0 %v379, 7
    %v381 = vpop.permute.xlu0 %380
    %vm382 = vcmask 80952
    %s383 = scalar_lea.vmem [#allocation0], 8
    %384 = vst.msk [vmem:[%s383] sm:$0x1] %vm382, %v381
    %s385 = scalar_lea.vmem %s0, 2
    %v386 = vld [vmem:[%s385] sm:$0x1]
    %387 = vrot.lane.b32.xlu0 %v386, 6
    %v388 = vpop.permute.xlu0 %387
    %vm389 = vcmask 72752
    %390 = vst.msk [vmem:[#allocation0] sm:$0x1] %vm389, %v388
    %s391 = scalar_lea.vmem %s0, 44
    %v392 = vld [vmem:[%s391] sm:$0x1]
    %393 = vrot.lane.b32.xlu0 %v392, 4
    %v394 = vpop.permute.xlu0 %393
    %vm395 = vcmask 56352
    %s396 = scalar_lea.vmem [#allocation0], 8
    %397 = vst.msk [vmem:[%s396] sm:$0x1] %vm395, %v394
    %s398 = scalar_lea.vmem %s0, 1
    %v399 = vld [vmem:[%s398] sm:$0x1]
    %400 = vrot.lane.b32.xlu0 %v399, 3
    %v401 = vpop.permute.xlu0 %400
    %vm402 = vcmask 48152
    %403 = vst.msk [vmem:[#allocation0] sm:$0x1] %vm402, %v401
    %s404 = scalar_lea.vmem %s0, 43
    %v405 = vld [vmem:[%s404] sm:$0x1]
    %406 = vrot.lane.b32.xlu0 %v405, 1
    %v407 = vpop.permute.xlu0 %406
    %vm408 = vcmask 31752
    %s409 = scalar_lea.vmem [#allocation0], 8
    %410 = vst.msk [vmem:[%s409] sm:$0x1] %vm408, %v407
    %s412 = sshllo.u32 0, 1
    %v414 = vld [vmem:[#allocation0] sm:%s412]
    %s415 = sshllo.u32 0, 1
    %416 = vst [vmem:[%s1] sm:%s415] %v414
    %s417 = scalar_lea.vmem [#allocation0], 8
    %v418 = vld [vmem:[%s417] sm:%s412]
    %s419 = sshllo.u32 0, 1
    %s420 = scalar_lea.vmem %s1, 1
    %421 = vst [vmem:[%s420] sm:%s419] %v418

// kernel: decoder_forward.15
$region0: #{decoder_forward.15}
  #allocation0 [shape = 'u32[]', space=smem, size = 0x4, offset = 0x4, fixed_abs, tag = 'smem constant byte address 0x4 - core index']
  #allocation1 [shape = 'u32[144,128]{1,0:T(1,128)}', space=vmem, size = 0x12000, scoped, tag = 'internal scratch']
  %s0 = inlined_call_operand.vmem [shape: f32[128,192], index: 0, kind: input, shape index: {}]
  %s1 = inlined_call_operand.vmem [shape: f32[1,192], index: 1, kind: input, shape index: {}]
  %s2 = inlined_call_operand.vmem [shape: f32[128,192], index: 2, kind: output, shape index: {}]
  %s3 = sld [smem:[#allocation0]]
  $region18: #{decoder_forward.15} parent=0
    _
  %s5 = ssub.s32 1, %s3
  %s6 = scalar_select 0, %s5, %s3
  // Predicated region
  $region2: #{decoder_forward.15} parent=0 // pred_check
    _
  $region3: #{decoder_forward.15} parent=0 // pred_check_branch
    %8 = sbr.rel (0) target = $region5
  $region4: #{decoder_forward.15} parent=0 // pred_region
    _
  $region5: #{decoder_forward.15} parent=0 // pred_fallthru
    _
  // Predicated region
  $region6: #{decoder_forward.15} parent=0 // pred_check
    _
  $region7: #{decoder_forward.15} parent=0 // pred_check_branch
    %10 = sbr.rel (0) target = $region9
  $region8: #{decoder_forward.15} parent=0 // pred_region
    _
  $region9: #{decoder_forward.15} parent=0 // pred_fallthru
    _
  %v11 = vld [vmem:[%s0] sm:$0xff]
  %v12 = vld [vmem:[%s0 + $0x8] sm:$0xff]
  %v13 = vld [vmem:[%s0 + $0x10] sm:$0xff]
  %v14 = vld [vmem:[%s0 + $0x18] sm:$0xff]
  %v15 = vld [vmem:[%s0 + $0x20] sm:$0xff]
  %v16 = vld [vmem:[%s0 + $0x28] sm:$0xff]
  %v17 = vld [vmem:[%s0 + $0x30] sm:$0xff]
  %v18 = vld [vmem:[%s0 + $0x38] sm:$0xff]
  %v19 = vld [vmem:[%s0 + $0x40] sm:$0xff]
  %v20 = vld [vmem:[%s0 + $0x48] sm:$0xff]
  %v21 = vld [vmem:[%s0 + $0x50] sm:$0xff]
  %v22 = vld [vmem:[%s0 + $0x58] sm:$0xff]
  %v23 = vld [vmem:[%s0 + $0x60] sm:$0xff]
  %v24 = vld [vmem:[%s0 + $0x68] sm:$0xff]
  %v25 = vld [vmem:[%s0 + $0x70] sm:$0xff]
  %v26 = vld [vmem:[%s0 + $0x78] sm:$0xff]
  %v27 = vld [vmem:[%s0 + $0x80] sm:$0xff]
  %v28 = vld [vmem:[%s0 + $0x88] sm:$0xff]
  %v29 = vld [vmem:[%s0 + $0x90] sm:$0xff]
  %v30 = vld [vmem:[%s0 + $0x98] sm:$0xff]
  %v31 = vld [vmem:[%s0 + $0xa0] sm:$0xff]
  %v32 = vld [vmem:[%s0 + $0xa8] sm:$0xff]
  %v33 = vld [vmem:[%s0 + $0xb0] sm:$0xff]
  %v34 = vld [vmem:[%s0 + $0xb8] sm:$0xff]
  %v35 = vld [vmem:[%s0 + $0xc0] sm:$0xff]
  %v36 = vld [vmem:[%s0 + $0xc8] sm:$0xff]
  %v37 = vld [vmem:[%s0 + $0xd0] sm:$0xff]
  %v38 = vld [vmem:[%s0 + $0xd8] sm:$0xff]
  %v39 = vld [vmem:[%s0 + $0xe0] sm:$0xff]
  %v40 = vld [vmem:[%s0 + $0xe8] sm:$0xff]
  %v41 = vld [vmem:[%s0 + $0xf0] sm:$0xff]
  %v42 = vld [vmem:[%s0 + $0xf8] sm:$0xff]
  %v43 = vld [vmem:[%s1] sm:$0x3]
  %v45 = vlaneseq
  %v46 = vshrl.u32 %v45, 7
  %v47 = vsub.s32 0, %v46
  %v48 = vrot.slane %v43, %v47
  %v49 = vlaneseq
  %v50 = vshrl.u32 %v49, 7
  %v51 = vsub.s32 1, %v50
  %v52 = vrot.slane %v43, %v51
  %v55 = vadd.f32 %v11, %v48
  %v56 = vadd.f32 %v12, %v52
  %v57 = vadd.f32 %v13, %v48
  %v58 = vadd.f32 %v14, %v52
  %v59 = vadd.f32 %v15, %v48
  %v60 = vadd.f32 %v16, %v52
  %v61 = vadd.f32 %v17, %v48
  %v62 = vadd.f32 %v18, %v52
  %v63 = vadd.f32 %v19, %v48
  %v64 = vadd.f32 %v20, %v52
  %v65 = vadd.f32 %v21, %v48
  %v66 = vadd.f32 %v22, %v52
  %v67 = vadd.f32 %v23, %v48
  %v68 = vadd.f32 %v24, %v52
  %v69 = vadd.f32 %v25, %v48
  %v70 = vadd.f32 %v26, %v52
  %v71 = vadd.f32 %v27, %v48
  %v72 = vadd.f32 %v28, %v52
  %v73 = vadd.f32 %v29, %v48
  %v74 = vadd.f32 %v30, %v52
  %v75 = vadd.f32 %v31, %v48
  %v76 = vadd.f32 %v32, %v52
  %v77 = vadd.f32 %v33, %v48
  %v78 = vadd.f32 %v34, %v52
  %v79 = vadd.f32 %v35, %v48
  %v80 = vadd.f32 %v36, %v52
  %v81 = vadd.f32 %v37, %v48
  %v82 = vadd.f32 %v38, %v52
  %v83 = vadd.f32 %v39, %v48
  %v84 = vadd.f32 %v40, %v52
  %v85 = vadd.f32 %v41, %v48
  %v86 = vadd.f32 %v42, %v52
  %v87 = vxor.u32 %v55, 2147483648
  %v88 = vxor.u32 %v56, 2147483648
  %v89 = vxor.u32 %v57, 2147483648
  %v90 = vxor.u32 %v58, 2147483648
  %v91 = vxor.u32 %v59, 2147483648
  %v92 = vxor.u32 %v60, 2147483648
  %v93 = vxor.u32 %v61, 2147483648
  %v94 = vxor.u32 %v62, 2147483648
  %v95 = vxor.u32 %v63, 2147483648
  %v96 = vxor.u32 %v64, 2147483648
  %v97 = vxor.u32 %v65, 2147483648
  %v98 = vxor.u32 %v66, 2147483648
  %v99 = vxor.u32 %v67, 2147483648
  %v100 = vxor.u32 %v68, 2147483648
  %v101 = vxor.u32 %v69, 2147483648
  %v102 = vxor.u32 %v70, 2147483648
  %v103 = vxor.u32 %v71, 2147483648
  %v104 = vxor.u32 %v72, 2147483648
  %v105 = vxor.u32 %v73, 2147483648
  %v106 = vxor.u32 %v74, 2147483648
  %v107 = vxor.u32 %v75, 2147483648
  %v108 = vxor.u32 %v76, 2147483648
  %v109 = vxor.u32 %v77, 2147483648
  %v110 = vxor.u32 %v78, 2147483648
  %v111 = vxor.u32 %v79, 2147483648
  %v112 = vxor.u32 %v80, 2147483648
  %v113 = vxor.u32 %v81, 2147483648
  %v114 = vxor.u32 %v82, 2147483648
  %v115 = vxor.u32 %v83, 2147483648
  %v116 = vxor.u32 %v84, 2147483648
  %v117 = vxor.u32 %v85, 2147483648
  %v118 = vxor.u32 %v86, 2147483648
  %v119 = vmul.f32 %v87, 1.442695
  %v120 = vpow.pop %v119
  %v121 = vmul.f32 %v88, 1.442695
  %v122 = vpow.pop %v121
  %v123 = vmul.f32 %v89, 1.442695
  %v124 = vpow.pop %v123
  %v125 = vmul.f32 %v90, 1.442695
  %v126 = vpow.pop %v125
  %v127 = vmul.f32 %v91, 1.442695
  %v128 = vpow.pop %v127
  %v129 = vmul.f32 %v92, 1.442695
  %v130 = vpow.pop %v129
  %v131 = vmul.f32 %v93, 1.442695
  %v132 = vpow.pop %v131
  %v133 = vmul.f32 %v94, 1.442695
  %v134 = vpow.pop %v133
  %v135 = vmul.f32 %v95, 1.442695
  %v136 = vpow.pop %v135
  %v137 = vmul.f32 %v96, 1.442695
  %v138 = vpow.pop %v137
  %v139 = vmul.f32 %v97, 1.442695
  %v140 = vpow.pop %v139
  %v141 = vmul.f32 %v98, 1.442695
  %v142 = vpow.pop %v141
  %v143 = vmul.f32 %v99, 1.442695
  %v144 = vpow.pop %v143
  %v145 = vmul.f32 %v100, 1.442695
  %v146 = vpow.pop %v145
  %v147 = vmul.f32 %v101, 1.442695
  %v148 = vpow.pop %v147
  %v149 = vmul.f32 %v102, 1.442695
  %v150 = vpow.pop %v149
  %v151 = vmul.f32 %v103, 1.442695
  %v152 = vpow.pop %v151
  %v153 = vmul.f32 %v104, 1.442695
  %v154 = vpow.pop %v153
  %v155 = vmul.f32 %v105, 1.442695
  %v156 = vpow.pop %v155
  %v157 = vmul.f32 %v106, 1.442695
  %v158 = vpow.pop %v157
  %v159 = vmul.f32 %v107, 1.442695
  %v160 = vpow.pop %v159
  %v161 = vmul.f32 %v108, 1.442695
  %v162 = vpow.pop %v161
  %v163 = vmul.f32 %v109, 1.442695
  %v164 = vpow.pop %v163
  %v165 = vmul.f32 %v110, 1.442695
  %v166 = vpow.pop %v165
  %v167 = vmul.f32 %v111, 1.442695
  %v168 = vpow.pop %v167
  %v169 = vmul.f32 %v112, 1.442695
  %v170 = vpow.pop %v169
  %v171 = vmul.f32 %v113, 1.442695
  %v172 = vpow.pop %v171
  %v173 = vmul.f32 %v114, 1.442695
  %v174 = vpow.pop %v173
  %v175 = vmul.f32 %v115, 1.442695
  %v176 = vpow.pop %v175
  %v177 = vmul.f32 %v116, 1.442695
  %v178 = vpow.pop %v177
  %v179 = vmul.f32 %v117, 1.442695
  %v180 = vpow.pop %v179
  %v181 = vmul.f32 %v118, 1.442695
  %v182 = vpow.pop %v181
  %v183 = vadd.f32 %v120, 1.0
  %v184 = vadd.f32 %v122, 1.0
  %v185 = vadd.f32 %v124, 1.0
  %v186 = vadd.f32 %v126, 1.0
  %v187 = vadd.f32 %v128, 1.0
  %v188 = vadd.f32 %v130, 1.0
  %v189 = vadd.f32 %v132, 1.0
  %v190 = vadd.f32 %v134, 1.0
  %v191 = vadd.f32 %v136, 1.0
  %v192 = vadd.f32 %v138, 1.0
  %v193 = vadd.f32 %v140, 1.0
  %v194 = vadd.f32 %v142, 1.0
  %v195 = vadd.f32 %v144, 1.0
  %v196 = vadd.f32 %v146, 1.0
  %v197 = vadd.f32 %v148, 1.0
  %v198 = vadd.f32 %v150, 1.0
  %v199 = vadd.f32 %v152, 1.0
  %v200 = vadd.f32 %v154, 1.0
  %v201 = vadd.f32 %v156, 1.0
  %v202 = vadd.f32 %v158, 1.0
  %v203 = vadd.f32 %v160, 1.0
  %v204 = vadd.f32 %v162, 1.0
  %v205 = vadd.f32 %v164, 1.0
  %v206 = vadd.f32 %v166, 1.0
  %v207 = vadd.f32 %v168, 1.0
  %v208 = vadd.f32 %v170, 1.0
  %v209 = vadd.f32 %v172, 1.0
  %v210 = vadd.f32 %v174, 1.0
  %v211 = vadd.f32 %v176, 1.0
  %v212 = vadd.f32 %v178, 1.0
  %v213 = vadd.f32 %v180, 1.0
  %v214 = vadd.f32 %v182, 1.0
  %v215 = vrcp.pop %v183
  %v216 = vmul.f32 1.0, %v215
  %v217 = vrcp.pop %v184
  %v218 = vmul.f32 1.0, %v217
  %v219 = vrcp.pop %v185
  %v220 = vmul.f32 1.0, %v219
  %v221 = vrcp.pop %v186
  %v222 = vmul.f32 1.0, %v221
  %v223 = vrcp.pop %v187
  %v224 = vmul.f32 1.0, %v223
  %v225 = vrcp.pop %v188
  %v226 = vmul.f32 1.0, %v225
  %v227 = vrcp.pop %v189
  %v228 = vmul.f32 1.0, %v227
  %v229 = vrcp.pop %v190
  %v230 = vmul.f32 1.0, %v229
  %v231 = vrcp.pop %v191
  %v232 = vmul.f32 1.0, %v231
  %v233 = vrcp.pop %v192
  %v234 = vmul.f32 1.0, %v233
  %v235 = vrcp.pop %v193
  %v236 = vmul.f32 1.0, %v235
  %v237 = vrcp.pop %v194
  %v238 = vmul.f32 1.0, %v237
  %v239 = vrcp.pop %v195
  %v240 = vmul.f32 1.0, %v239
  %v241 = vrcp.pop %v196
  %v242 = vmul.f32 1.0, %v241
  %v243 = vrcp.pop %v197
  %v244 = vmul.f32 1.0, %v243
  %v245 = vrcp.pop %v198
  %v246 = vmul.f32 1.0, %v245
  %v247 = vrcp.pop %v199
  %v248 = vmul.f32 1.0, %v247
  %v249 = vrcp.pop %v200
  %v250 = vmul.f32 1.0, %v249
  %v251 = vrcp.pop %v201
  %v252 = vmul.f32 1.0, %v251
  %v253 = vrcp.pop %v202
  %v254 = vmul.f32 1.0, %v253
  %v255 = vrcp.pop %v203
  %v256 = vmul.f32 1.0, %v255
  %v257 = vrcp.pop %v204
  %v258 = vmul.f32 1.0, %v257
  %v259 = vrcp.pop %v205
  %v260 = vmul.f32 1.0, %v259
  %v261 = vrcp.pop %v206
  %v262 = vmul.f32 1.0, %v261
  %v263 = vrcp.pop %v207
  %v264 = vmul.f32 1.0, %v263
  %v265 = vrcp.pop %v208
  %v266 = vmul.f32 1.0, %v265
  %v267 = vrcp.pop %v209
  %v268 = vmul.f32 1.0, %v267
  %v269 = vrcp.pop %v210
  %v270 = vmul.f32 1.0, %v269
  %v271 = vrcp.pop %v211
  %v272 = vmul.f32 1.0, %v271
  %v273 = vrcp.pop %v212
  %v274 = vmul.f32 1.0, %v273
  %v275 = vrcp.pop %v213
  %v276 = vmul.f32 1.0, %v275
  %v277 = vrcp.pop %v214
  %v278 = vmul.f32 1.0, %v277
  %279 = vst [vmem:[%s2] sm:$0xff] %v216
  %vm280 = vcmask 523264
  %281 = vst.msk [vmem:[%s2 + $0x8] sm:$0xff] %vm280, %v218
  %282 = vst [vmem:[%s2 + $0x10] sm:$0xff] %v220
  %283 = vst.msk [vmem:[%s2 + $0x18] sm:$0xff] %vm280, %v222
  %284 = vst [vmem:[%s2 + $0x20] sm:$0xff] %v224
  %285 = vst.msk [vmem:[%s2 + $0x28] sm:$0xff] %vm280, %v226
  %286 = vst [vmem:[%s2 + $0x30] sm:$0xff] %v228
  %287 = vst.msk [vmem:[%s2 + $0x38] sm:$0xff] %vm280, %v230
  %288 = vst [vmem:[%s2 + $0x40] sm:$0xff] %v232
  %289 = vst.msk [vmem:[%s2 + $0x48] sm:$0xff] %vm280, %v234
  %290 = vst [vmem:[%s2 + $0x50] sm:$0xff] %v236
  %291 = vst.msk [vmem:[%s2 + $0x58] sm:$0xff] %vm280, %v238
  %292 = vst [vmem:[%s2 + $0x60] sm:$0xff] %v240
  %293 = vst.msk [vmem:[%s2 + $0x68] sm:$0xff] %vm280, %v242
  %294 = vst [vmem:[%s2 + $0x70] sm:$0xff] %v244
  %295 = vst.msk [vmem:[%s2 + $0x78] sm:$0xff] %vm280, %v246
  %296 = vst [vmem:[%s2 + $0x80] sm:$0xff] %v248
  %297 = vst.msk [vmem:[%s2 + $0x88] sm:$0xff] %vm280, %v250
  %298 = vst [vmem:[%s2 + $0x90] sm:$0xff] %v252
  %299 = vst.msk [vmem:[%s2 + $0x98] sm:$0xff] %vm280, %v254
  %300 = vst [vmem:[%s2 + $0xa0] sm:$0xff] %v256
  %301 = vst.msk [vmem:[%s2 + $0xa8] sm:$0xff] %vm280, %v258
  %302 = vst [vmem:[%s2 + $0xb0] sm:$0xff] %v260
  %303 = vst.msk [vmem:[%s2 + $0xb8] sm:$0xff] %vm280, %v262
  %304 = vst [vmem:[%s2 + $0xc0] sm:$0xff] %v264
  %305 = vst.msk [vmem:[%s2 + $0xc8] sm:$0xff] %vm280, %v266
  %306 = vst [vmem:[%s2 + $0xd0] sm:$0xff] %v268
  %307 = vst.msk [vmem:[%s2 + $0xd8] sm:$0xff] %vm280, %v270
  %308 = vst [vmem:[%s2 + $0xe0] sm:$0xff] %v272
  %309 = vst.msk [vmem:[%s2 + $0xe8] sm:$0xff] %vm280, %v274
  %310 = vst [vmem:[%s2 + $0xf0] sm:$0xff] %v276
  %311 = vst.msk [vmem:[%s2 + $0xf8] sm:$0xff] %vm280, %v278
  // Predicated region
  $region10: #{decoder_forward.15} parent=0 // pred_check
    _
  $region11: #{decoder_forward.15} parent=0 // pred_check_branch
    %313 = sbr.rel (0) target = $region13
  $region12: #{decoder_forward.15} parent=0 // pred_region
    _
  $region13: #{decoder_forward.15} parent=0 // pred_fallthru
    _
  // Predicated region
  $region14: #{decoder_forward.15} parent=0 // pred_check
    _
  $region15: #{decoder_forward.15} parent=0 // pred_check_branch
    %315 = sbr.rel (0) target = $region17
  $region16: #{decoder_forward.15} parent=0 // pred_region
    _
  $region17: #{decoder_forward.15} parent=0 // pred_fallthru
    _

</llo_original>
